<compile_context>
chip_gen: v7x
topology: tpu7x:2x2x1
jax: 0.10.0
libtpu: 0.0.40
codegen_flags: <defaults>
</compile_context>

<pallas_src>
import functools

import jax
import jax.numpy as jnp
from jax.experimental import pallas as pl
from jax.experimental.pallas import tpu as pltpu


# ---------------------------------------------------------------------------
# Helpers
# ---------------------------------------------------------------------------
def _pick_batch_tile(n, rows_per_image, bytes_per_image):
    """Images per grid step: aim for >=128 matmul rows, <=8MiB input block,
    and keep >=2 grid steps (megacore / dual-TC) when the batch allows it."""
    candidates = [d for d in range(1, n + 1)
                  if n % d == 0
                  and d * rows_per_image <= 1024
                  and d * bytes_per_image <= (8 << 20)]
    if not candidates:
        return 1
    multi = [d for d in candidates if n // d >= 2]
    pool = multi if multi else candidates
    good = [d for d in pool if d * rows_per_image >= 128]
    return min(good) if good else max(pool)


# Tap (dy, dx) -> (phase-source index, row offset within that phase).
#   sources 0..2 : even padded rows, column phase dx = 0,1,2
#   sources 3..5 : odd  padded rows, column phase dx = 0,1,2
_CONV_TAPS = tuple(
    ((dx if dy != 1 else 3 + dx), (1 if dy == 2 else 0))
    for dy in range(3) for dx in range(3)
)


# ---------------------------------------------------------------------------
# Kernels
# ---------------------------------------------------------------------------
def _conv_kernel(ph_ref, w_ref, b_ref, out_ref, *, hp, taps):
    """Stride-2 3x3 conv as 9 batch-folded MXU matmuls on phase tensors.

    ph_ref : (Nb, 6*Hp, Wo, Cin)  bf16, Hp = Ho + 1
    w_ref  : (9, Cin, Cout)       bf16
    b_ref  : (1, Cout)            f32
    out_ref: (Nb, Ho, Wo, Cout)   f32
    """
    nb, _, wo, cin = ph_ref.shape
    ho = hp - 1
    cout = w_ref.shape[2]
    m = nb * ho * wo

    acc = jnp.zeros((m, cout), jnp.float32)
    for t, (src, ro) in enumerate(taps):
        base = src * hp + ro                      # static major-axis offset
        patch = ph_ref[:, base:base + ho, :, :].reshape(m, cin)
        acc = acc + jnp.dot(patch, w_ref[t],
                            preferred_element_type=jnp.float32)
    acc = acc + b_ref[...]
    out_ref[...] = acc.reshape(nb, ho, wo, cout)


def _pool_kernel(ph_ref, out_ref, *, ho):
    """2x2 average pool: mean of the 4 parity phases (pure VPU)."""
    s = (ph_ref[:, 0:ho] + ph_ref[:, ho:2 * ho]
         + ph_ref[:, 2 * ho:3 * ho] + ph_ref[:, 3 * ho:4 * ho])
    out_ref[...] = s * 0.25


# ---------------------------------------------------------------------------
# Wrappers (PyTorch NCHW in/out)
# ---------------------------------------------------------------------------
def _conv_downsample(x_nhwc, w_oihw, bias):
    N, H, W, C = x_nhwc.shape
    Cout = w_oihw.shape[0]
    Ho, Wo, Hp = H // 2, W // 2, H // 2 + 1

    # Zero-pad once, then split into the 6 stride-2 phase sources.
    xp = jnp.pad(x_nhwc, ((0, 0), (1, 1), (1, 1), (0, 0)))
    even_r, odd_r = xp[:, 0::2], xp[:, 1::2]            # (N, Hp, W+2, C)
    srcs = []
    for rows in (even_r, odd_r):
        for dx in range(3):
            srcs.append(rows[:, :, dx:dx + 2 * Wo:2, :])   # (N, Hp, Wo, C)
    phases = jnp.stack(srcs, axis=1).reshape(N, 6 * Hp, Wo, C)
    phases = phases.astype(jnp.bfloat16)

    w9 = jnp.transpose(w_oihw, (2, 3, 1, 0)).reshape(9, C, Cout)
    w9 = w9.astype(jnp.bfloat16)
    b = bias.reshape(1, Cout).astype(jnp.float32)

    nb = _pick_batch_tile(N, Ho * Wo, 6 * Hp * Wo * C * 2)
    grid = (N // nb,)

    kernel = functools.partial(_conv_kernel, hp=Hp, taps=_CONV_TAPS)
    return pl.pallas_call(
        kernel,
        out_shape=jax.ShapeDtypeStruct((N, Ho, Wo, Cout), jnp.float32),
        grid=grid,
        in_specs=[
            pl.BlockSpec((nb, 6 * Hp, Wo, C), lambda i: (i, 0, 0, 0)),
            pl.BlockSpec((9, C, Cout), lambda i: (0, 0, 0)),
            pl.BlockSpec((1, Cout), lambda i: (0, 0)),
        ],
        out_specs=pl.BlockSpec((nb, Ho, Wo, Cout), lambda i: (i, 0, 0, 0)),
        compiler_params=pltpu.CompilerParams(
            dimension_semantics=("parallel",)),
        cost_estimate=pl.CostEstimate(
            flops=2 * 9 * N * Ho * Wo * C * Cout,
            transcendentals=0,
            bytes_accessed=(phases.size * 2 + w9.size * 2
                            + N * Ho * Wo * Cout * 4)),
    )(phases, w9, b)


def _pool_downsample(x_nhwc):
    N, H, W, C = x_nhwc.shape
    Ho, Wo = H // 2, W // 2

    p = [x_nhwc[:, r::2, c::2, :] for r in range(2) for c in range(2)]
    phases = jnp.stack(p, axis=1).reshape(N, 4 * Ho, Wo, C)
    phases = phases.astype(jnp.float32)

    nb = _pick_batch_tile(N, Ho * Wo, 4 * Ho * Wo * C * 4)
    grid = (N // nb,)

    kernel = functools.partial(_pool_kernel, ho=Ho)
    return pl.pallas_call(
        kernel,
        out_shape=jax.ShapeDtypeStruct((N, Ho, Wo, C), jnp.float32),
        grid=grid,
        in_specs=[pl.BlockSpec((nb, 4 * Ho, Wo, C), lambda i: (i, 0, 0, 0))],
        out_specs=pl.BlockSpec((nb, Ho, Wo, C), lambda i: (i, 0, 0, 0)),
        compiler_params=pltpu.CompilerParams(
            dimension_semantics=("parallel",)),
        cost_estimate=pl.CostEstimate(
            flops=4 * N * Ho * Wo * C,
            transcendentals=0,
            bytes_accessed=phases.size * 4 + N * Ho * Wo * C * 4),
    )(phases)


def downsample_forward(x_nchw, params, use_conv):
    """Downsample.forward for dims=2. x: (N, C, H, W) NCHW -> (N, Cout, H/2, W/2)."""
    N, C, H, W = x_nchw.shape
    assert H % 2 == 0 and W % 2 == 0, "even spatial sizes required"
    x_nhwc = jnp.transpose(x_nchw, (0, 2, 3, 1)).astype(jnp.float32)
    if use_conv:
        assert params["w"].shape[1] == C
        out_nhwc = _conv_downsample(x_nhwc, params["w"], params["b"])
    else:
        out_nhwc = _pool_downsample(x_nhwc)
    return jnp.transpose(out_nhwc, (0, 3, 1, 2))


# ---------------------------------------------------------------------------
# Pure-JAX reference (mirrors the PyTorch forward exactly)
# ---------------------------------------------------------------------------
def downsample_ref(x, params, use_conv):
    if use_conv:
        y = jax.lax.conv_general_dilated(
            x, params["w"], window_strides=(2, 2), padding=((1, 1), (1, 1)),
            dimension_numbers=("NCHW", "OIHW", "NCHW"))
        return y + params["b"][None, :, None, None]
    N, C, H, W = x.shape
    return x.reshape(N, C, H // 2, 2, W // 2, 2).mean(axis=(3, 5))


# ---------------------------------------------------------------------------
if __name__ == "__main__":
    N, C, H, W = 4, 128, 16, 16          # small, lane-dense (C multiple of 128)
    Cout = C                             # out_channels=None -> channels

    key = jax.random.PRNGKey(0)
    k1, k2, k3 = jax.random.split(key, 3)
    x = jax.random.normal(k1, (N, C, H, W), jnp.float32)
    params = {
        "w": 0.02 * jax.random.normal(k2, (Cout, C, 3, 3), jnp.float32),
        "b": 0.02 * jax.random.normal(k3, (Cout,), jnp.float32),
    }

    # use_conv=True path: stride-2 3x3 conv
    out_conv = jax.block_until_ready(downsample_forward(x, params, use_conv=True))
    ref_conv = jax.block_until_ready(downsample_ref(x, params, True))
    assert out_conv.shape == (N, Cout, H // 2, W // 2)
    err = float(jnp.max(jnp.abs(out_conv - ref_conv)))
    assert jnp.allclose(out_conv, ref_conv, atol=3e-2, rtol=3e-2), \
        f"conv max abs err {err}"

    # use_conv=False path: 2x2 average pool
    out_pool = jax.block_until_ready(downsample_forward(x, None, use_conv=False))
    ref_pool = jax.block_until_ready(downsample_ref(x, None, False))
    assert out_pool.shape == (N, C, H // 2, W // 2)
    assert jnp.allclose(out_pool, ref_pool, atol=1e-5, rtol=1e-5), \
        f"pool max abs err {float(jnp.max(jnp.abs(out_pool - ref_pool)))}"

    print("KERNEL_OK")
</pallas_src>

<mosaic_0001>
module attributes {stable_mosaic.version = 11 : i64} {
  func.func @_conv_kernel(%arg0: i32, %arg1: memref<2x54x8x128xbf16, #tpu.memory_space<vmem>>, %arg2: memref<9x128x128xbf16, #tpu.memory_space<vmem>>, %arg3: memref<1x128xf32, #tpu.memory_space<vmem>>, %arg4: memref<2x8x8x128xf32, #tpu.memory_space<vmem>>) attributes {dimension_semantics = [#tpu.dimension_semantics<parallel>], iteration_bounds = array<i64: 2>, scalar_prefetch = 0 : i64, scratch_operands = 0 : i64, tpu.core_type = #tpu.core_type<tc>, window_params = [{transform_indices = @transform_0, window_bounds = array<i64: 2, 54, 8, 128>}, {pipeline_mode = #tpu.pipeline_mode<synchronous>, transform_indices = @transform_1, window_bounds = array<i64: 9, 128, 128>}, {pipeline_mode = #tpu.pipeline_mode<synchronous>, transform_indices = @transform_2, window_bounds = array<i64: 1, 128>}, {transform_indices = @transform_3, window_bounds = array<i64: 2, 8, 8, 128>}]} {
    %cst = arith.constant 0.000000e+00 : f32
    %0 = vector.broadcast %cst : f32 to vector<128x128xf32>
    %c0 = arith.constant 0 : index
    %c0_0 = arith.constant 0 : index
    %c0_1 = arith.constant 0 : index
    %c0_2 = arith.constant 0 : index
    %1 = vector.load %arg1[%c0, %c0_0, %c0_1, %c0_2] : memref<2x54x8x128xbf16, #tpu.memory_space<vmem>>, vector<2x8x8x128xbf16>
    %2 = vector.shape_cast %1 : vector<2x8x8x128xbf16> to vector<128x128xbf16>
    %c0_3 = arith.constant 0 : index
    %c0_4 = arith.constant 0 : index
    %c0_5 = arith.constant 0 : index
    %3 = vector.load %arg2[%c0_3, %c0_4, %c0_5] : memref<9x128x128xbf16, #tpu.memory_space<vmem>>, vector<1x128x128xbf16>
    %4 = vector.shape_cast %3 : vector<1x128x128xbf16> to vector<128x128xbf16>
    %cst_6 = arith.constant dense<0.000000e+00> : vector<128x128xf32>
    %5 = tpu.matmul %2, %4, %cst_6 {dimension_numbers = #tpu.dot_dimension_numbers<[1], [0], [0], [1], [0, 0, 1, 1], [], []>} : vector<128x128xbf16>, vector<128x128xbf16>, vector<128x128xf32> -> vector<128x128xf32>
    %6 = arith.addf %0, %5 : vector<128x128xf32>
    %c0_7 = arith.constant 0 : index
    %c9 = arith.constant 9 : index
    %c0_8 = arith.constant 0 : index
    %c0_9 = arith.constant 0 : index
    %7 = vector.load %arg1[%c0_7, %c9, %c0_8, %c0_9] : memref<2x54x8x128xbf16, #tpu.memory_space<vmem>>, vector<2x8x8x128xbf16>
    %8 = vector.shape_cast %7 : vector<2x8x8x128xbf16> to vector<128x128xbf16>
    %c1 = arith.constant 1 : index
    %c0_10 = arith.constant 0 : index
    %c0_11 = arith.constant 0 : index
    %9 = vector.load %arg2[%c1, %c0_10, %c0_11] : memref<9x128x128xbf16, #tpu.memory_space<vmem>>, vector<1x128x128xbf16>
    %10 = vector.shape_cast %9 : vector<1x128x128xbf16> to vector<128x128xbf16>
    %cst_12 = arith.constant dense<0.000000e+00> : vector<128x128xf32>
    %11 = tpu.matmul %8, %10, %cst_12 {dimension_numbers = #tpu.dot_dimension_numbers<[1], [0], [0], [1], [0, 0, 1, 1], [], []>} : vector<128x128xbf16>, vector<128x128xbf16>, vector<128x128xf32> -> vector<128x128xf32>
    %12 = arith.addf %6, %11 : vector<128x128xf32>
    %c0_13 = arith.constant 0 : index
    %c18 = arith.constant 18 : index
    %c0_14 = arith.constant 0 : index
    %c0_15 = arith.constant 0 : index
    %13 = vector.load %arg1[%c0_13, %c18, %c0_14, %c0_15] : memref<2x54x8x128xbf16, #tpu.memory_space<vmem>>, vector<2x8x8x128xbf16>
    %14 = vector.shape_cast %13 : vector<2x8x8x128xbf16> to vector<128x128xbf16>
    %c2 = arith.constant 2 : index
    %c0_16 = arith.constant 0 : index
    %c0_17 = arith.constant 0 : index
    %15 = vector.load %arg2[%c2, %c0_16, %c0_17] : memref<9x128x128xbf16, #tpu.memory_space<vmem>>, vector<1x128x128xbf16>
    %16 = vector.shape_cast %15 : vector<1x128x128xbf16> to vector<128x128xbf16>
    %cst_18 = arith.constant dense<0.000000e+00> : vector<128x128xf32>
    %17 = tpu.matmul %14, %16, %cst_18 {dimension_numbers = #tpu.dot_dimension_numbers<[1], [0], [0], [1], [0, 0, 1, 1], [], []>} : vector<128x128xbf16>, vector<128x128xbf16>, vector<128x128xf32> -> vector<128x128xf32>
    %18 = arith.addf %12, %17 : vector<128x128xf32>
    %c0_19 = arith.constant 0 : index
    %c27 = arith.constant 27 : index
    %c0_20 = arith.constant 0 : index
    %c0_21 = arith.constant 0 : index
    %19 = vector.load %arg1[%c0_19, %c27, %c0_20, %c0_21] : memref<2x54x8x128xbf16, #tpu.memory_space<vmem>>, vector<2x8x8x128xbf16>
    %20 = vector.shape_cast %19 : vector<2x8x8x128xbf16> to vector<128x128xbf16>
    %c3 = arith.constant 3 : index
    %c0_22 = arith.constant 0 : index
    %c0_23 = arith.constant 0 : index
    %21 = vector.load %arg2[%c3, %c0_22, %c0_23] : memref<9x128x128xbf16, #tpu.memory_space<vmem>>, vector<1x128x128xbf16>
    %22 = vector.shape_cast %21 : vector<1x128x128xbf16> to vector<128x128xbf16>
    %cst_24 = arith.constant dense<0.000000e+00> : vector<128x128xf32>
    %23 = tpu.matmul %20, %22, %cst_24 {dimension_numbers = #tpu.dot_dimension_numbers<[1], [0], [0], [1], [0, 0, 1, 1], [], []>} : vector<128x128xbf16>, vector<128x128xbf16>, vector<128x128xf32> -> vector<128x128xf32>
    %24 = arith.addf %18, %23 : vector<128x128xf32>
    %c0_25 = arith.constant 0 : index
    %c36 = arith.constant 36 : index
    %c0_26 = arith.constant 0 : index
    %c0_27 = arith.constant 0 : index
    %25 = vector.load %arg1[%c0_25, %c36, %c0_26, %c0_27] : memref<2x54x8x128xbf16, #tpu.memory_space<vmem>>, vector<2x8x8x128xbf16>
    %26 = vector.shape_cast %25 : vector<2x8x8x128xbf16> to vector<128x128xbf16>
    %c4 = arith.constant 4 : index
    %c0_28 = arith.constant 0 : index
    %c0_29 = arith.constant 0 : index
    %27 = vector.load %arg2[%c4, %c0_28, %c0_29] : memref<9x128x128xbf16, #tpu.memory_space<vmem>>, vector<1x128x128xbf16>
    %28 = vector.shape_cast %27 : vector<1x128x128xbf16> to vector<128x128xbf16>
    %cst_30 = arith.constant dense<0.000000e+00> : vector<128x128xf32>
    %29 = tpu.matmul %26, %28, %cst_30 {dimension_numbers = #tpu.dot_dimension_numbers<[1], [0], [0], [1], [0, 0, 1, 1], [], []>} : vector<128x128xbf16>, vector<128x128xbf16>, vector<128x128xf32> -> vector<128x128xf32>
    %30 = arith.addf %24, %29 : vector<128x128xf32>
    %c0_31 = arith.constant 0 : index
    %c45 = arith.constant 45 : index
    %c0_32 = arith.constant 0 : index
    %c0_33 = arith.constant 0 : index
    %31 = vector.load %arg1[%c0_31, %c45, %c0_32, %c0_33] : memref<2x54x8x128xbf16, #tpu.memory_space<vmem>>, vector<2x8x8x128xbf16>
    %32 = vector.shape_cast %31 : vector<2x8x8x128xbf16> to vector<128x128xbf16>
    %c5 = arith.constant 5 : index
    %c0_34 = arith.constant 0 : index
    %c0_35 = arith.constant 0 : index
    %33 = vector.load %arg2[%c5, %c0_34, %c0_35] : memref<9x128x128xbf16, #tpu.memory_space<vmem>>, vector<1x128x128xbf16>
    %34 = vector.shape_cast %33 : vector<1x128x128xbf16> to vector<128x128xbf16>
    %cst_36 = arith.constant dense<0.000000e+00> : vector<128x128xf32>
    %35 = tpu.matmul %32, %34, %cst_36 {dimension_numbers = #tpu.dot_dimension_numbers<[1], [0], [0], [1], [0, 0, 1, 1], [], []>} : vector<128x128xbf16>, vector<128x128xbf16>, vector<128x128xf32> -> vector<128x128xf32>
    %36 = arith.addf %30, %35 : vector<128x128xf32>
    %c0_37 = arith.constant 0 : index
    %c1_38 = arith.constant 1 : index
    %c0_39 = arith.constant 0 : index
    %c0_40 = arith.constant 0 : index
    %37 = vector.load %arg1[%c0_37, %c1_38, %c0_39, %c0_40] : memref<2x54x8x128xbf16, #tpu.memory_space<vmem>>, vector<2x8x8x128xbf16>
    %38 = vector.shape_cast %37 : vector<2x8x8x128xbf16> to vector<128x128xbf16>
    %c6 = arith.constant 6 : index
    %c0_41 = arith.constant 0 : index
    %c0_42 = arith.constant 0 : index
    %39 = vector.load %arg2[%c6, %c0_41, %c0_42] : memref<9x128x128xbf16, #tpu.memory_space<vmem>>, vector<1x128x128xbf16>
    %40 = vector.shape_cast %39 : vector<1x128x128xbf16> to vector<128x128xbf16>
    %cst_43 = arith.constant dense<0.000000e+00> : vector<128x128xf32>
    %41 = tpu.matmul %38, %40, %cst_43 {dimension_numbers = #tpu.dot_dimension_numbers<[1], [0], [0], [1], [0, 0, 1, 1], [], []>} : vector<128x128xbf16>, vector<128x128xbf16>, vector<128x128xf32> -> vector<128x128xf32>
    %42 = arith.addf %36, %41 : vector<128x128xf32>
    %c0_44 = arith.constant 0 : index
    %c10 = arith.constant 10 : index
    %c0_45 = arith.constant 0 : index
    %c0_46 = arith.constant 0 : index
    %43 = vector.load %arg1[%c0_44, %c10, %c0_45, %c0_46] : memref<2x54x8x128xbf16, #tpu.memory_space<vmem>>, vector<2x8x8x128xbf16>
    %44 = vector.shape_cast %43 : vector<2x8x8x128xbf16> to vector<128x128xbf16>
    %c7 = arith.constant 7 : index
    %c0_47 = arith.constant 0 : index
    %c0_48 = arith.constant 0 : index
    %45 = vector.load %arg2[%c7, %c0_47, %c0_48] : memref<9x128x128xbf16, #tpu.memory_space<vmem>>, vector<1x128x128xbf16>
    %46 = vector.shape_cast %45 : vector<1x128x128xbf16> to vector<128x128xbf16>
    %cst_49 = arith.constant dense<0.000000e+00> : vector<128x128xf32>
    %47 = tpu.matmul %44, %46, %cst_49 {dimension_numbers = #tpu.dot_dimension_numbers<[1], [0], [0], [1], [0, 0, 1, 1], [], []>} : vector<128x128xbf16>, vector<128x128xbf16>, vector<128x128xf32> -> vector<128x128xf32>
    %48 = arith.addf %42, %47 : vector<128x128xf32>
    %c0_50 = arith.constant 0 : index
    %c19 = arith.constant 19 : index
    %c0_51 = arith.constant 0 : index
    %c0_52 = arith.constant 0 : index
    %49 = vector.load %arg1[%c0_50, %c19, %c0_51, %c0_52] : memref<2x54x8x128xbf16, #tpu.memory_space<vmem>>, vector<2x8x8x128xbf16>
    %50 = vector.shape_cast %49 : vector<2x8x8x128xbf16> to vector<128x128xbf16>
    %c8 = arith.constant 8 : index
    %c0_53 = arith.constant 0 : index
    %c0_54 = arith.constant 0 : index
    %51 = vector.load %arg2[%c8, %c0_53, %c0_54] : memref<9x128x128xbf16, #tpu.memory_space<vmem>>, vector<1x128x128xbf16>
    %52 = vector.shape_cast %51 : vector<1x128x128xbf16> to vector<128x128xbf16>
    %cst_55 = arith.constant dense<0.000000e+00> : vector<128x128xf32>
    %53 = tpu.matmul %50, %52, %cst_55 {dimension_numbers = #tpu.dot_dimension_numbers<[1], [0], [0], [1], [0, 0, 1, 1], [], []>} : vector<128x128xbf16>, vector<128x128xbf16>, vector<128x128xf32> -> vector<128x128xf32>
    %54 = arith.addf %48, %53 : vector<128x128xf32>
    %c0_56 = arith.constant 0 : index
    %c0_57 = arith.constant 0 : index
    %55 = vector.load %arg3[%c0_56, %c0_57] : memref<1x128xf32, #tpu.memory_space<vmem>>, vector<1x128xf32>
    %56 = vector.broadcast %55 : vector<1x128xf32> to vector<128x128xf32>
    %57 = arith.addf %54, %56 : vector<128x128xf32>
    %58 = vector.shape_cast %57 : vector<128x128xf32> to vector<2x8x8x128xf32>
    %c0_58 = arith.constant 0 : index
    %c0_59 = arith.constant 0 : index
    %c0_60 = arith.constant 0 : index
    %c0_61 = arith.constant 0 : index
    %59 = vector.load %arg4[%c0_58, %c0_59, %c0_60, %c0_61] : memref<2x8x8x128xf32, #tpu.memory_space<vmem>>, vector<2x8x8x128xf32>
    tpu.vector_store %arg4[%c0_58, %c0_59, %c0_60, %c0_61], %58 {strides = array<i32>} : memref<2x8x8x128xf32, #tpu.memory_space<vmem>>, vector<2x8x8x128xf32>,
    return
  }
  func.func @transform_0(%arg0: i32) -> (i32, i32, i32, i32) {
    %c0_i32 = arith.constant 0 : i32
    %c0_i32_0 = arith.constant 0 : i32
    %c0_i32_1 = arith.constant 0 : i32
    %c0_i32_2 = arith.constant 0 : i32
    return %arg0, %c0_i32, %c0_i32_0, %c0_i32_1 : i32, i32, i32, i32
  }
  func.func @transform_1(%arg0: i32) -> (i32, i32, i32) {
    %c0_i32 = arith.constant 0 : i32
    %c0_i32_0 = arith.constant 0 : i32
    %c0_i32_1 = arith.constant 0 : i32
    %c0_i32_2 = arith.constant 0 : i32
    return %c0_i32, %c0_i32_0, %c0_i32_1 : i32, i32, i32
  }
  func.func @transform_2(%arg0: i32) -> (i32, i32) {
    %c0_i32 = arith.constant 0 : i32
    %c0_i32_0 = arith.constant 0 : i32
    %c0_i32_1 = arith.constant 0 : i32
    return %c0_i32, %c0_i32_0 : i32, i32
  }
  func.func @transform_3(%arg0: i32) -> (i32, i32, i32, i32) {
    %c0_i32 = arith.constant 0 : i32
    %c0_i32_0 = arith.constant 0 : i32
    %c0_i32_1 = arith.constant 0 : i32
    %c0_i32_2 = arith.constant 0 : i32
    return %arg0, %c0_i32, %c0_i32_0, %c0_i32_1 : i32, i32, i32, i32
  }
}

</mosaic_0001>

<llo_original>
// kernel: tpu_custom_call.1
$region0: #{tpu_custom_call.1}
  #allocation0 [shape = 'u32[]', space=smem, size = 0x4, offset = 0x4, fixed_abs, tag = 'smem constant byte address 0x4 - core index']
  #allocation1 [shape = 'u32[144,128]{1,0:T(1,128)}', space=vmem, size = 0x12000, scoped, tag = 'internal scratch']
  %s0 = inlined_call_operand.hbm [shape: bf16[4,54,8,128], index: 0, kind: input, shape index: {}]
  %s1 = inlined_call_operand.hbm [shape: bf16[9,128,128], index: 1, kind: input, shape index: {}]
  %s2 = inlined_call_operand.vmem [shape: f32[1,128], index: 2, kind: input, shape index: {}]
  %s3 = inlined_call_operand.hbm [shape: f32[4,8,8,128], index: 3, kind: output, shape index: {}]
  %s4 = sld [smem:[#allocation0]]
  $region53: #{tpu_custom_call.1} parent=0
    _
  %s6 = ssub.s32 1, %s4
  %s7 = scalar_select 0, %s6, %s4
  $region1: #{tpu_custom_call.1} parent=0
    #allocation2 [shape = 'u8[442368]{0}', space=vmem, size = 0x6c000, scoped, tag = 'input window, operand 0']
    #allocation3 [shape = 's32[2]{0}', space=sflag, size = 0x8, scoped, tag = 'scoped memory for tpu_custom_call.1']
    #allocation4 [shape = 's32[2]{0}', space=sflag, size = 0x8, scoped, tag = 'scoped memory for tpu_custom_call.1']
    #allocation5 [shape = 'u8[294912]{0}', space=vmem, size = 0x48000, scoped, tag = 'input window, operand 1, single buffered']
    #allocation6 [shape = 's32[1]{0}', space=sflag, size = 0x4, scoped, tag = 'scoped memory for tpu_custom_call.1']
    #allocation7 [shape = 'u8[131072]{0}', space=vmem, size = 0x20000, scoped, tag = 'output window, operand 0']
    %8 = vsyncpa [#allocation3], 0
    %s9 = scalar_lea.sflag [#allocation3], 1
    %10 = vsyncpa %s9, 0
    %11 = vsyncpa [#allocation6], 0
    %12 = vsyncpa [#allocation4], 0
    %s13 = scalar_lea.sflag [#allocation4], 1
    %14 = vsyncpa %s13, 0
    loop: start=0, step=1, limit=4
    $region2: #{tpu_custom_call.1} parent=1 // loop_pre_header
      _
    $region3: #{tpu_custom_call.1} parent=1 // loop_header
      %s16 = sphi 0, %s20
      %p17 = scmp.ge.s32.totalorder %s16, 4
      %s26 = sphi 0, %s28
      %s29 = sphi 0, %s26
      %s30 = sphi 0, %s29
      %s46 = sphi 0, %s30
      %s50 = sphi 0, %s50
      %s52 = sphi 0, %s50
      %s53 = sphi 0, %s52
      %s67 = sphi 0, %s53
      %s71 = sphi 0, %s71
      %s73 = sphi 0, %s71
      %s74 = sphi 0, %s73
      %s88 = sphi 0, %s74
      %s94 = sphi 0, %s96
      %s97 = sphi 0, %s94
      %s98 = sphi 0, %s97
      %s114 = sphi 0, %s98
    $region4: #{tpu_custom_call.1} parent=1 // loop_header_branch
      %19 = sbr.rel (%p17) target = $region8
    $region5: #{tpu_custom_call.1} parent=1 // loop_body
      %s21 = ssub.s32 %s16, 1
      %s22 = ssub.s32 %s16, 2
      %s23 = sadd.s32 %s16, 1
      %s24 = ssub.s32 %s16, %s23
      %p25 = scmp.eq.s32.totalorder %s24, 0
      %s27 = sadd.s32 %s26, 1
      %s28 = scalar_select %p25, %s26, %s27
      %p31 = pneg %p25
      %p32 = scmp.eq.s32.totalorder %s16, 1
      %p33 = por %p31, %p32
      %p34 = scmp.ne.s32.totalorder %s26, %s29
      %p35 = scmp.eq.s32.totalorder %s16, 0
      %p36 = por %p34, %p35
      %p37 = scmp.ne.s32.totalorder %s26, %s29
      %p38 = scmp.eq.s32.totalorder %s21, 1
      %p39 = por %p37, %p38
      %p40 = scmp.ne.s32.totalorder %s29, %s30
      %p41 = scmp.eq.s32.totalorder %s21, 0
      %p42 = por %p40, %p41
      %p43 = scmp.ne.s32.totalorder %s29, %s30
      %p44 = scmp.eq.s32.totalorder %s22, 1
      %p45 = por %p43, %p44
      %p47 = scmp.ne.s32.totalorder %s30, %s46
      %p48 = scmp.eq.s32.totalorder %s22, 0
      %p49 = por %p47, %p48
      %s51 = sadd.s32 %s50, 1
      %p54 = scmp.eq.s32.totalorder %s16, 1
      %p55 = scmp.ne.s32.totalorder %s50, %s52
      %p56 = scmp.eq.s32.totalorder %s16, 0
      %p57 = por %p55, %p56
      %p58 = scmp.ne.s32.totalorder %s50, %s52
      %p59 = scmp.eq.s32.totalorder %s21, 1
      %p60 = por %p58, %p59
      %p61 = scmp.ne.s32.totalorder %s52, %s53
      %p62 = scmp.eq.s32.totalorder %s21, 0
      %p63 = por %p61, %p62
      %p64 = scmp.ne.s32.totalorder %s52, %s53
      %p65 = scmp.eq.s32.totalorder %s22, 1
      %p66 = por %p64, %p65
      %p68 = scmp.ne.s32.totalorder %s53, %s67
      %p69 = scmp.eq.s32.totalorder %s22, 0
      %p70 = por %p68, %p69
      %s72 = sadd.s32 %s71, 1
      %p75 = scmp.eq.s32.totalorder %s16, 1
      %p76 = scmp.ne.s32.totalorder %s71, %s73
      %p77 = scmp.eq.s32.totalorder %s16, 0
      %p78 = por %p76, %p77
      %p79 = scmp.ne.s32.totalorder %s71, %s73
      %p80 = scmp.eq.s32.totalorder %s21, 1
      %p81 = por %p79, %p80
      %p82 = scmp.ne.s32.totalorder %s73, %s74
      %p83 = scmp.eq.s32.totalorder %s21, 0
      %p84 = por %p82, %p83
      %p85 = scmp.ne.s32.totalorder %s73, %s74
      %p86 = scmp.eq.s32.totalorder %s22, 1
      %p87 = por %p85, %p86
      %p89 = scmp.ne.s32.totalorder %s74, %s88
      %p90 = scmp.eq.s32.totalorder %s22, 0
      %p91 = por %p89, %p90
      %s92 = ssub.s32 %s16, %s23
      %p93 = scmp.eq.s32.totalorder %s92, 0
      %s95 = sadd.s32 %s94, 1
      %s96 = scalar_select %p93, %s94, %s95
      %p99 = pneg %p93
      %p100 = scmp.eq.s32.totalorder %s16, 1
      %p101 = por %p99, %p100
      %p102 = scmp.ne.s32.totalorder %s94, %s97
      %p103 = scmp.eq.s32.totalorder %s16, 0
      %p104 = por %p102, %p103
      %p105 = scmp.ne.s32.totalorder %s94, %s97
      %p106 = scmp.eq.s32.totalorder %s21, 1
      %p107 = por %p105, %p106
      %p108 = scmp.ne.s32.totalorder %s97, %s98
      %p109 = scmp.eq.s32.totalorder %s21, 0
      %p110 = por %p108, %p109
      %p111 = scmp.ne.s32.totalorder %s97, %s98
      %p112 = scmp.eq.s32.totalorder %s22, 1
      %p113 = por %p111, %p112
      %p115 = scmp.ne.s32.totalorder %s98, %s114
      %p116 = scmp.eq.s32.totalorder %s22, 0
      %p117 = por %p115, %p116
      %p118 = scmp.le.s32.totalorder 1, %s16
      %p119 = scmp.lt.s32.totalorder %s16, 3
      %p120 = pnand %p118, %p119
      %p121 = pneg %p120
      // Predicated region
      $region9: #{tpu_custom_call.1} parent=5 // pred_check
        _
      $region10: #{tpu_custom_call.1} parent=5 // pred_check_branch
        %123 = sbr.rel (%p120) target = $region12
      $region11: #{tpu_custom_call.1} parent=5 // pred_region
        %s124 = ssub.s32 %s16, 1
        // Predicated region
        $region13: #{tpu_custom_call.1} parent=11 // pred_check
          %p125 = pneg %p63
        $region14: #{tpu_custom_call.1} parent=11 // pred_check_branch
          %127 = sbr.rel (%p125) target = $region16
        $region15: #{tpu_custom_call.1} parent=11 // pred_region
          %s129 = ssub.s32 9216, 9216
          %130 = vsyncadd [#allocation6], %s129
          %s131 = sshll.u32 [#allocation5], 4
          %s132 = int_to_ptr.vmem [resolvable:$true] %s131
          %137 = dma.hbm_to_vmem [thread:$0]  %s1, 9216, %s132, [#allocation6], 64, 64, 4
        $region16: #{tpu_custom_call.1} parent=11 // pred_fallthru
          _
        // Predicated region
        $region17: #{tpu_custom_call.1} parent=11 // pred_check
          %p138 = pneg %p84
        $region18: #{tpu_custom_call.1} parent=11 // pred_check_branch
          %140 = sbr.rel (%p138) target = $region20
        $region19: #{tpu_custom_call.1} parent=11 // pred_region
          _
        $region20: #{tpu_custom_call.1} parent=11 // pred_fallthru
          _
      $region12: #{tpu_custom_call.1} parent=5 // pred_fallthru
        _
      %p141 = scmp.lt.s32.totalorder %s16, 2
      // Predicated region
      $region21: #{tpu_custom_call.1} parent=5 // pred_check
        %p142 = pneg %p141
      $region22: #{tpu_custom_call.1} parent=5 // pred_check_branch
        %144 = sbr.rel (%p142) target = $region24
      $region23: #{tpu_custom_call.1} parent=5 // pred_region
        // Predicated region
        $region25: #{tpu_custom_call.1} parent=23 // pred_check
          %p145 = pneg %p36
        $region26: #{tpu_custom_call.1} parent=23 // pred_check_branch
          %147 = sbr.rel (%p145) target = $region28
        $region27: #{tpu_custom_call.1} parent=23 // pred_region
          %s148 = sand.u32 %s26, 1
          %s149 = scalar_lea.sflag [#allocation3], %s148
          %s150 = sand.u32 %s26, 1
          %s151 = smul.addr %s150, 432
          %s152 = scalar_lea.vmem [#allocation2], %s151
          %s153 = smul.u32 2, %s16
          %s155 = ssub.s32 6912, 6912
          %156 = vsyncadd %s149, %s155
          %s157 = smul.addr %s153, 54
          %s158 = smul.addr %s157, 64
          %s159 = scalar_lea.hbm %s0, %s158
          %s160 = sshll.u32 %s152, 4
          %s161 = int_to_ptr.vmem [resolvable:$true] %s160
          %166 = dma.hbm_to_vmem [thread:$0]  %s159, 6912, %s161, %s149, 64, 64, 4
        $region28: #{tpu_custom_call.1} parent=23 // pred_fallthru
          _
      $region24: #{tpu_custom_call.1} parent=5 // pred_fallthru
        _
      %p167 = scmp.le.s32.totalorder 1, %s16
      %p168 = scmp.lt.s32.totalorder %s16, 3
      %p169 = pnand %p167, %p168
      %p170 = pneg %p169
      // Predicated region
      $region29: #{tpu_custom_call.1} parent=5 // pred_check
        _
      $region30: #{tpu_custom_call.1} parent=5 // pred_check_branch
        %172 = sbr.rel (%p169) target = $region32
      $region31: #{tpu_custom_call.1} parent=5 // pred_region
        %s173 = ssub.s32 %s16, 1
        %s174 = sand.u32 %s29, 1
        %s175 = scalar_lea.sflag [#allocation3], %s174
        %s176 = sand.u32 %s29, 1
        %s177 = smul.addr %s176, 432
        %s178 = scalar_lea.vmem [#allocation2], %s177
        // Predicated region
        $region33: #{tpu_custom_call.1} parent=31 // pred_check
          %p179 = pneg %p42
        $region34: #{tpu_custom_call.1} parent=31 // pred_check_branch
          %181 = sbr.rel (%p179) target = $region36
        $region35: #{tpu_custom_call.1} parent=31 // pred_region
          %182 = dma.done %s175, 6912
        $region36: #{tpu_custom_call.1} parent=31 // pred_fallthru
          _
        // Predicated region
        $region37: #{tpu_custom_call.1} parent=31 // pred_check
          %p183 = pneg %p63
        $region38: #{tpu_custom_call.1} parent=31 // pred_check_branch
          %185 = sbr.rel (%p183) target = $region40
        $region39: #{tpu_custom_call.1} parent=31 // pred_region
          %186 = dma.done [#allocation6], 9216
        $region40: #{tpu_custom_call.1} parent=31 // pred_fallthru
          _
        %s187 = sand.u32 %s29, 1
        %s188 = scalar_lea.sflag [#allocation3], %s187
        %s189 = sand.u32 %s29, 1
        %s190 = smul.addr %s189, 432
        %s191 = scalar_lea.vmem [#allocation2], %s190
        %p192 = pneg %p42
        %p193 = pneg %p39
        %p194 = pneg %p63
        %p195 = pneg %p60
        %p196 = pneg %p84
        %p197 = pneg %p81
        %p198 = pneg %p110
        %p199 = pneg %p107
        %s200 = sand.u32 %s97, 1
        %s201 = scalar_lea.sflag [#allocation4], %s200
        %s202 = sand.u32 %s97, 1
        %s203 = smul.addr %s202, 128
        %s204 = scalar_lea.vmem [#allocation7], %s203
        %s205 = smul.u32 2, %s21
        %s206 = smul.u32 2, %s21
        %v208 = vld [vmem:[%s178] sm:$0xf]
        %v209 = vld [vmem:[%s178 + $0x4] sm:$0xf]
        %v210 = vld [vmem:[%s178 + $0x8] sm:$0xf]
        %v211 = vld [vmem:[%s178 + $0xc] sm:$0xf]
        %v212 = vld [vmem:[%s178 + $0x10] sm:$0xf]
        %v213 = vld [vmem:[%s178 + $0x14] sm:$0xf]
        %v214 = vld [vmem:[%s178 + $0x18] sm:$0xf]
        %v215 = vld [vmem:[%s178 + $0x1c] sm:$0xf]
        %v216 = vld [vmem:[%s178 + $0xd8] sm:$0xf]
        %v217 = vld [vmem:[%s178 + $0xdc] sm:$0xf]
        %v218 = vld [vmem:[%s178 + $0xe0] sm:$0xf]
        %v219 = vld [vmem:[%s178 + $0xe4] sm:$0xf]
        %v220 = vld [vmem:[%s178 + $0xe8] sm:$0xf]
        %v221 = vld [vmem:[%s178 + $0xec] sm:$0xf]
        %v222 = vld [vmem:[%s178 + $0xf0] sm:$0xf]
        %v223 = vld [vmem:[%s178 + $0xf4] sm:$0xf]
        %v224 = vld [vmem:[#allocation5] sm:$0xf]
        %v225 = vld [vmem:[#allocation5 + $0x4] sm:$0xf]
        %v226 = vld [vmem:[#allocation5 + $0x8] sm:$0xf]
        %v227 = vld [vmem:[#allocation5 + $0xc] sm:$0xf]
        %v228 = vld [vmem:[#allocation5 + $0x10] sm:$0xf]
        %v229 = vld [vmem:[#allocation5 + $0x14] sm:$0xf]
        %v230 = vld [vmem:[#allocation5 + $0x18] sm:$0xf]
        %v231 = vld [vmem:[#allocation5 + $0x1c] sm:$0xf]
        %v232 = vld [vmem:[#allocation5 + $0x20] sm:$0xf]
        %v233 = vld [vmem:[#allocation5 + $0x24] sm:$0xf]
        %v234 = vld [vmem:[#allocation5 + $0x28] sm:$0xf]
        %v235 = vld [vmem:[#allocation5 + $0x2c] sm:$0xf]
        %v236 = vld [vmem:[#allocation5 + $0x30] sm:$0xf]
        %v237 = vld [vmem:[#allocation5 + $0x34] sm:$0xf]
        %v238 = vld [vmem:[#allocation5 + $0x38] sm:$0xf]
        %v239 = vld [vmem:[#allocation5 + $0x3c] sm:$0xf]
        %s240 = scalar_lea.vmem %s178, 36 [#allocation2]
        %v241 = vld [vmem:[%s240] sm:$0xf]
        %v242 = vld [vmem:[%s240 + $0x4] sm:$0xf]
        %v243 = vld [vmem:[%s240 + $0x8] sm:$0xf]
        %v244 = vld [vmem:[%s240 + $0xc] sm:$0xf]
        %v245 = vld [vmem:[%s240 + $0x10] sm:$0xf]
        %v246 = vld [vmem:[%s240 + $0x14] sm:$0xf]
        %v247 = vld [vmem:[%s240 + $0x18] sm:$0xf]
        %v248 = vld [vmem:[%s240 + $0x1c] sm:$0xf]
        %v249 = vld [vmem:[%s240 + $0xd8] sm:$0xf]
        %v250 = vld [vmem:[%s240 + $0xdc] sm:$0xf]
        %v251 = vld [vmem:[%s240 + $0xe0] sm:$0xf]
        %v252 = vld [vmem:[%s240 + $0xe4] sm:$0xf]
        %v253 = vld [vmem:[%s240 + $0xe8] sm:$0xf]
        %v254 = vld [vmem:[%s240 + $0xec] sm:$0xf]
        %v255 = vld [vmem:[%s240 + $0xf0] sm:$0xf]
        %v256 = vld [vmem:[%s240 + $0xf4] sm:$0xf]
        %s257 = scalar_lea.vmem [#allocation5], 64
        %v258 = vld [vmem:[%s257] sm:$0xf]
        %v259 = vld [vmem:[%s257 + $0x4] sm:$0xf]
        %v260 = vld [vmem:[%s257 + $0x8] sm:$0xf]
        %v261 = vld [vmem:[%s257 + $0xc] sm:$0xf]
        %v262 = vld [vmem:[%s257 + $0x10] sm:$0xf]
        %v263 = vld [vmem:[%s257 + $0x14] sm:$0xf]
        %v264 = vld [vmem:[%s257 + $0x18] sm:$0xf]
        %v265 = vld [vmem:[%s257 + $0x1c] sm:$0xf]
        %v266 = vld [vmem:[%s257 + $0x20] sm:$0xf]
        %v267 = vld [vmem:[%s257 + $0x24] sm:$0xf]
        %v268 = vld [vmem:[%s257 + $0x28] sm:$0xf]
        %v269 = vld [vmem:[%s257 + $0x2c] sm:$0xf]
        %v270 = vld [vmem:[%s257 + $0x30] sm:$0xf]
        %v271 = vld [vmem:[%s257 + $0x34] sm:$0xf]
        %v272 = vld [vmem:[%s257 + $0x38] sm:$0xf]
        %v273 = vld [vmem:[%s257 + $0x3c] sm:$0xf]
        %v290 = vunpack.c.l.b16 %v241
        %v291 = vunpack.c.l.b16 %v242
        %v292 = vunpack.c.l.b16 %v243
        %v293 = vunpack.c.l.b16 %v244
        %v294 = vunpack.c.l.b16 %v245
        %v295 = vunpack.c.l.b16 %v246
        %v296 = vunpack.c.l.b16 %v247
        %v297 = vunpack.c.l.b16 %v248
        %v298 = vunpack.c.l.b16 %v249
        %v299 = vunpack.c.l.b16 %v250
        %v300 = vunpack.c.l.b16 %v251
        %v301 = vunpack.c.l.b16 %v252
        %v302 = vunpack.c.l.b16 %v253
        %v303 = vunpack.c.l.b16 %v254
        %v304 = vunpack.c.l.b16 %v255
        %v305 = vunpack.c.l.b16 %v256
        %v306 = vpack.c.b16 %v291, %v290
        %v307 = vpack.c.b16 %v293, %v292
        %v308 = vpack.c.b16 %v295, %v294
        %v309 = vpack.c.b16 %v297, %v296
        %v310 = vpack.c.b16 %v299, %v298
        %v311 = vpack.c.b16 %v301, %v300
        %v312 = vpack.c.b16 %v303, %v302
        %v313 = vpack.c.b16 %v305, %v304
        %v338 = vunpack.c.l.b16 %v258
        %v339 = vunpack.c.l.b16 %v259
        %v340 = vunpack.c.l.b16 %v260
        %v341 = vunpack.c.l.b16 %v261
        %v342 = vunpack.c.l.b16 %v262
        %v343 = vunpack.c.l.b16 %v263
        %v344 = vunpack.c.l.b16 %v264
        %v345 = vunpack.c.l.b16 %v265
        %v346 = vunpack.c.l.b16 %v266
        %v347 = vunpack.c.l.b16 %v267
        %v348 = vunpack.c.l.b16 %v268
        %v349 = vunpack.c.l.b16 %v269
        %v350 = vunpack.c.l.b16 %v270
        %v351 = vunpack.c.l.b16 %v271
        %v352 = vunpack.c.l.b16 %v272
        %v353 = vunpack.c.l.b16 %v273
        %v354 = vpack.c.b16 %v339, %v338
        %v355 = vpack.c.b16 %v341, %v340
        %v356 = vpack.c.b16 %v343, %v342
        %v357 = vpack.c.b16 %v345, %v344
        %v358 = vpack.c.b16 %v347, %v346
        %v359 = vpack.c.b16 %v349, %v348
        %v360 = vpack.c.b16 %v351, %v350
        %v361 = vpack.c.b16 %v353, %v352
        %370 = vmatprep.subr.bf16.mxu0 0
        %371 = vmatpush1.bf16.msra.mxu0 %v354
        %372 = vmatprep.subr.bf16.mxu0 0
        %373 = vmatpush1.bf16.msra.mxu0 %v355
        %374 = vmatprep.subr.bf16.mxu0 0
        %375 = vmatpush1.bf16.msra.mxu0 %v356
        %376 = vmatprep.subr.bf16.mxu0 0
        %377 = vmatpush1.bf16.msra.mxu0 %v357
        %378 = vmatprep.subr.bf16.mxu0 0
        %379 = vmatpush1.bf16.msra.mxu0 %v358
        %380 = vmatprep.subr.bf16.mxu0 0
        %381 = vmatpush1.bf16.msra.mxu0 %v359
        %382 = vmatprep.subr.bf16.mxu0 0
        %383 = vmatpush1.bf16.msra.mxu0 %v360
        %384 = vmatprep.subr.bf16.mxu0 0
        %385 = vmatpush1.bf16.msra.mxu0 %v361
        %386 = vmatprep.subr.bf16.mxu0 0
        %387 = vmatpush1.bf16.msra.mxu0 0
        %388 = vmatprep.subr.bf16.mxu0 0
        %389 = vmatpush1.bf16.msra.mxu0 0
        %390 = vmatprep.subr.bf16.mxu0 0
        %391 = vmatpush1.bf16.msra.mxu0 0
        %392 = vmatprep.subr.bf16.mxu0 0
        %393 = vmatpush1.bf16.msra.mxu0 0
        %394 = vmatprep.subr.bf16.mxu0 0
        %395 = vmatpush1.bf16.msra.mxu0 0
        %396 = vmatprep.subr.bf16.mxu0 0
        %397 = vmatpush1.bf16.msra.mxu0 0
        %398 = vmatprep.subr.bf16.mxu0 0
        %399 = vmatpush1.bf16.msra.mxu0 0
        %400 = vmatprep.subr.bf16.mxu0 0
        %401 = vmatpush1.bf16.msra.mxu0 0
        %402 = vmatprep.mubr.bf16.mxu0 0
        %403 = vmatmul.mubr.bf16.gmra.mrb[0].mxu0 %v306
        %v404 = vpop.f32.mrb[0].mxu0
        %v405 = vadd.f32 0.0, %v404
        %v406 = vpop.f32.mrb[0].mxu0
        %v407 = vpop.f32.mrb[0].mxu0
        %v408 = vadd.f32 0.0, %v407
        %v409 = vpop.f32.mrb[0].mxu0
        %410 = vmatprep.mubr.bf16.mxu0 0
        %411 = vmatmul.mubr.bf16.gmra.mrb[0].mxu0 %v307
        %v412 = vpop.f32.mrb[0].mxu0
        %v413 = vadd.f32 0.0, %v412
        %v414 = vpop.f32.mrb[0].mxu0
        %v415 = vpop.f32.mrb[0].mxu0
        %v416 = vadd.f32 0.0, %v415
        %v417 = vpop.f32.mrb[0].mxu0
        %418 = vmatprep.mubr.bf16.mxu0 0
        %419 = vmatmul.mubr.bf16.gmra.mrb[0].mxu0 %v308
        %v420 = vpop.f32.mrb[0].mxu0
        %v421 = vadd.f32 0.0, %v420
        %v422 = vpop.f32.mrb[0].mxu0
        %v423 = vpop.f32.mrb[0].mxu0
        %v424 = vadd.f32 0.0, %v423
        %v425 = vpop.f32.mrb[0].mxu0
        %426 = vmatprep.mubr.bf16.mxu0 0
        %427 = vmatmul.mubr.bf16.gmra.mrb[0].mxu0 %v309
        %v428 = vpop.f32.mrb[0].mxu0
        %v429 = vadd.f32 0.0, %v428
        %v430 = vpop.f32.mrb[0].mxu0
        %v431 = vpop.f32.mrb[0].mxu0
        %v432 = vadd.f32 0.0, %v431
        %v433 = vpop.f32.mrb[0].mxu0
        %434 = vmatprep.mubr.bf16.mxu0 0
        %435 = vmatmul.mubr.bf16.gmra.mrb[0].mxu0 %v310
        %v436 = vpop.f32.mrb[0].mxu0
        %v437 = vadd.f32 0.0, %v436
        %v438 = vpop.f32.mrb[0].mxu0
        %v439 = vpop.f32.mrb[0].mxu0
        %v440 = vadd.f32 0.0, %v439
        %v441 = vpop.f32.mrb[0].mxu0
        %442 = vmatprep.mubr.bf16.mxu0 0
        %443 = vmatmul.mubr.bf16.gmra.mrb[0].mxu0 %v311
        %v444 = vpop.f32.mrb[0].mxu0
        %v445 = vadd.f32 0.0, %v444
        %v446 = vpop.f32.mrb[0].mxu0
        %v447 = vpop.f32.mrb[0].mxu0
        %v448 = vadd.f32 0.0, %v447
        %v449 = vpop.f32.mrb[0].mxu0
        %450 = vmatprep.mubr.bf16.mxu0 0
        %451 = vmatmul.mubr.bf16.gmra.mrb[0].mxu0 %v312
        %v452 = vpop.f32.mrb[0].mxu0
        %v453 = vadd.f32 0.0, %v452
        %v454 = vpop.f32.mrb[0].mxu0
        %v455 = vpop.f32.mrb[0].mxu0
        %v456 = vadd.f32 0.0, %v455
        %v457 = vpop.f32.mrb[0].mxu0
        %458 = vmatprep.mubr.bf16.mxu0 0
        %459 = vmatmul.mubr.bf16.gmra.mrb[0].mxu0 %v313
        %v460 = vpop.f32.mrb[0].mxu0
        %v461 = vadd.f32 0.0, %v460
        %v462 = vpop.f32.mrb[0].mxu0
        %v463 = vpop.f32.mrb[0].mxu0
        %v464 = vadd.f32 0.0, %v463
        %v465 = vpop.f32.mrb[0].mxu0
        %466 = vdwg.mxu0
        %v483 = vunpack.c.l.b16 %v208
        %v484 = vunpack.c.l.b16 %v209
        %v485 = vunpack.c.l.b16 %v210
        %v486 = vunpack.c.l.b16 %v211
        %v487 = vunpack.c.l.b16 %v212
        %v488 = vunpack.c.l.b16 %v213
        %v489 = vunpack.c.l.b16 %v214
        %v490 = vunpack.c.l.b16 %v215
        %v491 = vunpack.c.l.b16 %v216
        %v492 = vunpack.c.l.b16 %v217
        %v493 = vunpack.c.l.b16 %v218
        %v494 = vunpack.c.l.b16 %v219
        %v495 = vunpack.c.l.b16 %v220
        %v496 = vunpack.c.l.b16 %v221
        %v497 = vunpack.c.l.b16 %v222
        %v498 = vunpack.c.l.b16 %v223
        %v499 = vpack.c.b16 %v484, %v483
        %v500 = vpack.c.b16 %v486, %v485
        %v501 = vpack.c.b16 %v488, %v487
        %v502 = vpack.c.b16 %v490, %v489
        %v503 = vpack.c.b16 %v492, %v491
        %v504 = vpack.c.b16 %v494, %v493
        %v505 = vpack.c.b16 %v496, %v495
        %v506 = vpack.c.b16 %v498, %v497
        %v531 = vunpack.c.l.b16 %v224
        %v532 = vunpack.c.l.b16 %v225
        %v533 = vunpack.c.l.b16 %v226
        %v534 = vunpack.c.l.b16 %v227
        %v535 = vunpack.c.l.b16 %v228
        %v536 = vunpack.c.l.b16 %v229
        %v537 = vunpack.c.l.b16 %v230
        %v538 = vunpack.c.l.b16 %v231
        %v539 = vunpack.c.l.b16 %v232
        %v540 = vunpack.c.l.b16 %v233
        %v541 = vunpack.c.l.b16 %v234
        %v542 = vunpack.c.l.b16 %v235
        %v543 = vunpack.c.l.b16 %v236
        %v544 = vunpack.c.l.b16 %v237
        %v545 = vunpack.c.l.b16 %v238
        %v546 = vunpack.c.l.b16 %v239
        %v547 = vpack.c.b16 %v532, %v531
        %v548 = vpack.c.b16 %v534, %v533
        %v549 = vpack.c.b16 %v536, %v535
        %v550 = vpack.c.b16 %v538, %v537
        %v551 = vpack.c.b16 %v540, %v539
        %v552 = vpack.c.b16 %v542, %v541
        %v553 = vpack.c.b16 %v544, %v543
        %v554 = vpack.c.b16 %v546, %v545
        %563 = vmatprep.subr.bf16.mxu0 0
        %564 = vmatpush1.bf16.msra.mxu0 %v547
        %565 = vmatprep.subr.bf16.mxu0 0
        %566 = vmatpush1.bf16.msra.mxu0 %v548
        %567 = vmatprep.subr.bf16.mxu0 0
        %568 = vmatpush1.bf16.msra.mxu0 %v549
        %569 = vmatprep.subr.bf16.mxu0 0
        %570 = vmatpush1.bf16.msra.mxu0 %v550
        %571 = vmatprep.subr.bf16.mxu0 0
        %572 = vmatpush1.bf16.msra.mxu0 %v551
        %573 = vmatprep.subr.bf16.mxu0 0
        %574 = vmatpush1.bf16.msra.mxu0 %v552
        %575 = vmatprep.subr.bf16.mxu0 0
        %576 = vmatpush1.bf16.msra.mxu0 %v553
        %577 = vmatprep.subr.bf16.mxu0 0
        %578 = vmatpush1.bf16.msra.mxu0 %v554
        %579 = vmatprep.subr.bf16.mxu0 0
        %580 = vmatpush1.bf16.msra.mxu0 0
        %581 = vmatprep.subr.bf16.mxu0 0
        %582 = vmatpush1.bf16.msra.mxu0 0
        %583 = vmatprep.subr.bf16.mxu0 0
        %584 = vmatpush1.bf16.msra.mxu0 0
        %585 = vmatprep.subr.bf16.mxu0 0
        %586 = vmatpush1.bf16.msra.mxu0 0
        %587 = vmatprep.subr.bf16.mxu0 0
        %588 = vmatpush1.bf16.msra.mxu0 0
        %589 = vmatprep.subr.bf16.mxu0 0
        %590 = vmatpush1.bf16.msra.mxu0 0
        %591 = vmatprep.subr.bf16.mxu0 0
        %592 = vmatpush1.bf16.msra.mxu0 0
        %593 = vmatprep.subr.bf16.mxu0 0
        %594 = vmatpush1.bf16.msra.mxu0 0
        %595 = vmatprep.mubr.bf16.mxu0 0
        %596 = vmatmul.mubr.bf16.gmra.mrb[0].mxu0 %v499
        %v597 = vpop.f32.mrb[0].mxu0
        %v598 = vadd.f32 %v405, %v597
        %v599 = vpop.f32.mrb[0].mxu0
        %v600 = vpop.f32.mrb[0].mxu0
        %v601 = vadd.f32 %v408, %v600
        %v602 = vpop.f32.mrb[0].mxu0
        %603 = vmatprep.mubr.bf16.mxu0 0
        %604 = vmatmul.mubr.bf16.gmra.mrb[0].mxu0 %v500
        %v605 = vpop.f32.mrb[0].mxu0
        %v606 = vadd.f32 %v413, %v605
        %v607 = vpop.f32.mrb[0].mxu0
        %v608 = vpop.f32.mrb[0].mxu0
        %v609 = vadd.f32 %v416, %v608
        %v610 = vpop.f32.mrb[0].mxu0
        %611 = vmatprep.mubr.bf16.mxu0 0
        %612 = vmatmul.mubr.bf16.gmra.mrb[0].mxu0 %v501
        %v613 = vpop.f32.mrb[0].mxu0
        %v614 = vadd.f32 %v421, %v613
        %v615 = vpop.f32.mrb[0].mxu0
        %v616 = vpop.f32.mrb[0].mxu0
        %v617 = vadd.f32 %v424, %v616
        %v618 = vpop.f32.mrb[0].mxu0
        %619 = vmatprep.mubr.bf16.mxu0 0
        %620 = vmatmul.mubr.bf16.gmra.mrb[0].mxu0 %v502
        %v621 = vpop.f32.mrb[0].mxu0
        %v622 = vadd.f32 %v429, %v621
        %v623 = vpop.f32.mrb[0].mxu0
        %v624 = vpop.f32.mrb[0].mxu0
        %v625 = vadd.f32 %v432, %v624
        %v626 = vpop.f32.mrb[0].mxu0
        %627 = vmatprep.mubr.bf16.mxu0 0
        %628 = vmatmul.mubr.bf16.gmra.mrb[0].mxu0 %v503
        %v629 = vpop.f32.mrb[0].mxu0
        %v630 = vadd.f32 %v437, %v629
        %v631 = vpop.f32.mrb[0].mxu0
        %v632 = vpop.f32.mrb[0].mxu0
        %v633 = vadd.f32 %v440, %v632
        %v634 = vpop.f32.mrb[0].mxu0
        %635 = vmatprep.mubr.bf16.mxu0 0
        %636 = vmatmul.mubr.bf16.gmra.mrb[0].mxu0 %v504
        %v637 = vpop.f32.mrb[0].mxu0
        %v638 = vadd.f32 %v445, %v637
        %v639 = vpop.f32.mrb[0].mxu0
        %v640 = vpop.f32.mrb[0].mxu0
        %v641 = vadd.f32 %v448, %v640
        %v642 = vpop.f32.mrb[0].mxu0
        %643 = vmatprep.mubr.bf16.mxu0 0
        %644 = vmatmul.mubr.bf16.gmra.mrb[0].mxu0 %v505
        %v645 = vpop.f32.mrb[0].mxu0
        %v646 = vadd.f32 %v453, %v645
        %v647 = vpop.f32.mrb[0].mxu0
        %v648 = vpop.f32.mrb[0].mxu0
        %v649 = vadd.f32 %v456, %v648
        %v650 = vpop.f32.mrb[0].mxu0
        %651 = vmatprep.mubr.bf16.mxu0 0
        %652 = vmatmul.mubr.bf16.gmra.mrb[0].mxu0 %v506
        %v653 = vpop.f32.mrb[0].mxu0
        %v654 = vadd.f32 %v461, %v653
        %v655 = vpop.f32.mrb[0].mxu0
        %v656 = vpop.f32.mrb[0].mxu0
        %v657 = vadd.f32 %v464, %v656
        %v658 = vpop.f32.mrb[0].mxu0
        %659 = vdwg.mxu0
        %s660 = scalar_lea.vmem %s178, 72 [#allocation2]
        %v661 = vld [vmem:[%s660] sm:$0xf]
        %v662 = vld [vmem:[%s660 + $0x4] sm:$0xf]
        %v663 = vld [vmem:[%s660 + $0x8] sm:$0xf]
        %v664 = vld [vmem:[%s660 + $0xc] sm:$0xf]
        %v665 = vld [vmem:[%s660 + $0x10] sm:$0xf]
        %v666 = vld [vmem:[%s660 + $0x14] sm:$0xf]
        %v667 = vld [vmem:[%s660 + $0x18] sm:$0xf]
        %v668 = vld [vmem:[%s660 + $0x1c] sm:$0xf]
        %v669 = vld [vmem:[%s660 + $0xd8] sm:$0xf]
        %v670 = vld [vmem:[%s660 + $0xdc] sm:$0xf]
        %v671 = vld [vmem:[%s660 + $0xe0] sm:$0xf]
        %v672 = vld [vmem:[%s660 + $0xe4] sm:$0xf]
        %v673 = vld [vmem:[%s660 + $0xe8] sm:$0xf]
        %v674 = vld [vmem:[%s660 + $0xec] sm:$0xf]
        %v675 = vld [vmem:[%s660 + $0xf0] sm:$0xf]
        %v676 = vld [vmem:[%s660 + $0xf4] sm:$0xf]
        %s677 = scalar_lea.vmem [#allocation5], 128
        %v678 = vld [vmem:[%s677] sm:$0xf]
        %v679 = vld [vmem:[%s677 + $0x4] sm:$0xf]
        %v680 = vld [vmem:[%s677 + $0x8] sm:$0xf]
        %v681 = vld [vmem:[%s677 + $0xc] sm:$0xf]
        %v682 = vld [vmem:[%s677 + $0x10] sm:$0xf]
        %v683 = vld [vmem:[%s677 + $0x14] sm:$0xf]
        %v684 = vld [vmem:[%s677 + $0x18] sm:$0xf]
        %v685 = vld [vmem:[%s677 + $0x1c] sm:$0xf]
        %v686 = vld [vmem:[%s677 + $0x20] sm:$0xf]
        %v687 = vld [vmem:[%s677 + $0x24] sm:$0xf]
        %v688 = vld [vmem:[%s677 + $0x28] sm:$0xf]
        %v689 = vld [vmem:[%s677 + $0x2c] sm:$0xf]
        %v690 = vld [vmem:[%s677 + $0x30] sm:$0xf]
        %v691 = vld [vmem:[%s677 + $0x34] sm:$0xf]
        %v692 = vld [vmem:[%s677 + $0x38] sm:$0xf]
        %v693 = vld [vmem:[%s677 + $0x3c] sm:$0xf]
        %v710 = vunpack.c.l.b16 %v661
        %v711 = vunpack.c.l.b16 %v662
        %v712 = vunpack.c.l.b16 %v663
        %v713 = vunpack.c.l.b16 %v664
        %v714 = vunpack.c.l.b16 %v665
        %v715 = vunpack.c.l.b16 %v666
        %v716 = vunpack.c.l.b16 %v667
        %v717 = vunpack.c.l.b16 %v668
        %v718 = vunpack.c.l.b16 %v669
        %v719 = vunpack.c.l.b16 %v670
        %v720 = vunpack.c.l.b16 %v671
        %v721 = vunpack.c.l.b16 %v672
        %v722 = vunpack.c.l.b16 %v673
        %v723 = vunpack.c.l.b16 %v674
        %v724 = vunpack.c.l.b16 %v675
        %v725 = vunpack.c.l.b16 %v676
        %v726 = vpack.c.b16 %v711, %v710
        %v727 = vpack.c.b16 %v713, %v712
        %v728 = vpack.c.b16 %v715, %v714
        %v729 = vpack.c.b16 %v717, %v716
        %v730 = vpack.c.b16 %v719, %v718
        %v731 = vpack.c.b16 %v721, %v720
        %v732 = vpack.c.b16 %v723, %v722
        %v733 = vpack.c.b16 %v725, %v724
        %v758 = vunpack.c.l.b16 %v678
        %v759 = vunpack.c.l.b16 %v679
        %v760 = vunpack.c.l.b16 %v680
        %v761 = vunpack.c.l.b16 %v681
        %v762 = vunpack.c.l.b16 %v682
        %v763 = vunpack.c.l.b16 %v683
        %v764 = vunpack.c.l.b16 %v684
        %v765 = vunpack.c.l.b16 %v685
        %v766 = vunpack.c.l.b16 %v686
        %v767 = vunpack.c.l.b16 %v687
        %v768 = vunpack.c.l.b16 %v688
        %v769 = vunpack.c.l.b16 %v689
        %v770 = vunpack.c.l.b16 %v690
        %v771 = vunpack.c.l.b16 %v691
        %v772 = vunpack.c.l.b16 %v692
        %v773 = vunpack.c.l.b16 %v693
        %v774 = vpack.c.b16 %v759, %v758
        %v775 = vpack.c.b16 %v761, %v760
        %v776 = vpack.c.b16 %v763, %v762
        %v777 = vpack.c.b16 %v765, %v764
        %v778 = vpack.c.b16 %v767, %v766
        %v779 = vpack.c.b16 %v769, %v768
        %v780 = vpack.c.b16 %v771, %v770
        %v781 = vpack.c.b16 %v773, %v772
        %790 = vmatprep.subr.bf16.mxu0 0
        %791 = vmatpush1.bf16.msra.mxu0 %v774
        %792 = vmatprep.subr.bf16.mxu0 0
        %793 = vmatpush1.bf16.msra.mxu0 %v775
        %794 = vmatprep.subr.bf16.mxu0 0
        %795 = vmatpush1.bf16.msra.mxu0 %v776
        %796 = vmatprep.subr.bf16.mxu0 0
        %797 = vmatpush1.bf16.msra.mxu0 %v777
        %798 = vmatprep.subr.bf16.mxu0 0
        %799 = vmatpush1.bf16.msra.mxu0 %v778
        %800 = vmatprep.subr.bf16.mxu0 0
        %801 = vmatpush1.bf16.msra.mxu0 %v779
        %802 = vmatprep.subr.bf16.mxu0 0
        %803 = vmatpush1.bf16.msra.mxu0 %v780
        %804 = vmatprep.subr.bf16.mxu0 0
        %805 = vmatpush1.bf16.msra.mxu0 %v781
        %806 = vmatprep.subr.bf16.mxu0 0
        %807 = vmatpush1.bf16.msra.mxu0 0
        %808 = vmatprep.subr.bf16.mxu0 0
        %809 = vmatpush1.bf16.msra.mxu0 0
        %810 = vmatprep.subr.bf16.mxu0 0
        %811 = vmatpush1.bf16.msra.mxu0 0
        %812 = vmatprep.subr.bf16.mxu0 0
        %813 = vmatpush1.bf16.msra.mxu0 0
        %814 = vmatprep.subr.bf16.mxu0 0
        %815 = vmatpush1.bf16.msra.mxu0 0
        %816 = vmatprep.subr.bf16.mxu0 0
        %817 = vmatpush1.bf16.msra.mxu0 0
        %818 = vmatprep.subr.bf16.mxu0 0
        %819 = vmatpush1.bf16.msra.mxu0 0
        %820 = vmatprep.subr.bf16.mxu0 0
        %821 = vmatpush1.bf16.msra.mxu0 0
        %822 = vmatprep.mubr.bf16.mxu0 0
        %823 = vmatmul.mubr.bf16.gmra.mrb[0].mxu0 %v726
        %v824 = vpop.f32.mrb[0].mxu0
        %v825 = vadd.f32 0.0, %v824
        %v826 = vpop.f32.mrb[0].mxu0
        %v827 = vpop.f32.mrb[0].mxu0
        %v828 = vadd.f32 0.0, %v827
        %v829 = vpop.f32.mrb[0].mxu0
        %830 = vmatprep.mubr.bf16.mxu0 0
        %831 = vmatmul.mubr.bf16.gmra.mrb[0].mxu0 %v727
        %v832 = vpop.f32.mrb[0].mxu0
        %v833 = vadd.f32 0.0, %v832
        %v834 = vpop.f32.mrb[0].mxu0
        %v835 = vpop.f32.mrb[0].mxu0
        %v836 = vadd.f32 0.0, %v835
        %v837 = vpop.f32.mrb[0].mxu0
        %838 = vmatprep.mubr.bf16.mxu0 0
        %839 = vmatmul.mubr.bf16.gmra.mrb[0].mxu0 %v728
        %v840 = vpop.f32.mrb[0].mxu0
        %v841 = vadd.f32 0.0, %v840
        %v842 = vpop.f32.mrb[0].mxu0
        %v843 = vpop.f32.mrb[0].mxu0
        %v844 = vadd.f32 0.0, %v843
        %v845 = vpop.f32.mrb[0].mxu0
        %846 = vmatprep.mubr.bf16.mxu0 0
        %847 = vmatmul.mubr.bf16.gmra.mrb[0].mxu0 %v729
        %v848 = vpop.f32.mrb[0].mxu0
        %v849 = vadd.f32 0.0, %v848
        %v850 = vpop.f32.mrb[0].mxu0
        %v851 = vpop.f32.mrb[0].mxu0
        %v852 = vadd.f32 0.0, %v851
        %v853 = vpop.f32.mrb[0].mxu0
        %854 = vmatprep.mubr.bf16.mxu0 0
        %855 = vmatmul.mubr.bf16.gmra.mrb[0].mxu0 %v730
        %v856 = vpop.f32.mrb[0].mxu0
        %v857 = vadd.f32 0.0, %v856
        %v858 = vpop.f32.mrb[0].mxu0
        %v859 = vpop.f32.mrb[0].mxu0
        %v860 = vadd.f32 0.0, %v859
        %v861 = vpop.f32.mrb[0].mxu0
        %862 = vmatprep.mubr.bf16.mxu0 0
        %863 = vmatmul.mubr.bf16.gmra.mrb[0].mxu0 %v731
        %v864 = vpop.f32.mrb[0].mxu0
        %v865 = vadd.f32 0.0, %v864
        %v866 = vpop.f32.mrb[0].mxu0
        %v867 = vpop.f32.mrb[0].mxu0
        %v868 = vadd.f32 0.0, %v867
        %v869 = vpop.f32.mrb[0].mxu0
        %870 = vmatprep.mubr.bf16.mxu0 0
        %871 = vmatmul.mubr.bf16.gmra.mrb[0].mxu0 %v732
        %v872 = vpop.f32.mrb[0].mxu0
        %v873 = vadd.f32 0.0, %v872
        %v874 = vpop.f32.mrb[0].mxu0
        %v875 = vpop.f32.mrb[0].mxu0
        %v876 = vadd.f32 0.0, %v875
        %v877 = vpop.f32.mrb[0].mxu0
        %878 = vmatprep.mubr.bf16.mxu0 0
        %879 = vmatmul.mubr.bf16.gmra.mrb[0].mxu0 %v733
        %v880 = vpop.f32.mrb[0].mxu0
        %v881 = vadd.f32 0.0, %v880
        %v882 = vpop.f32.mrb[0].mxu0
        %v883 = vpop.f32.mrb[0].mxu0
        %v884 = vadd.f32 0.0, %v883
        %v885 = vpop.f32.mrb[0].mxu0
        %886 = vdwg.mxu0
        %v887 = vadd.f32 %v598, %v825
        %v888 = vadd.f32 %v601, %v828
        %v889 = vadd.f32 %v606, %v833
        %v890 = vadd.f32 %v609, %v836
        %v891 = vadd.f32 %v614, %v841
        %v892 = vadd.f32 %v617, %v844
        %v893 = vadd.f32 %v622, %v849
        %v894 = vadd.f32 %v625, %v852
        %v895 = vadd.f32 %v630, %v857
        %v896 = vadd.f32 %v633, %v860
        %v897 = vadd.f32 %v638, %v865
        %v898 = vadd.f32 %v641, %v868
        %v899 = vadd.f32 %v646, %v873
        %v900 = vadd.f32 %v649, %v876
        %v901 = vadd.f32 %v654, %v881
        %v902 = vadd.f32 %v657, %v884
        %s903 = scalar_lea.vmem %s178, 108 [#allocation2]
        %v904 = vld [vmem:[%s903] sm:$0xf]
        %v905 = vld [vmem:[%s903 + $0x4] sm:$0xf]
        %v906 = vld [vmem:[%s903 + $0x8] sm:$0xf]
        %v907 = vld [vmem:[%s903 + $0xc] sm:$0xf]
        %v908 = vld [vmem:[%s903 + $0x10] sm:$0xf]
        %v909 = vld [vmem:[%s903 + $0x14] sm:$0xf]
        %v910 = vld [vmem:[%s903 + $0x18] sm:$0xf]
        %v911 = vld [vmem:[%s903 + $0x1c] sm:$0xf]
        %v912 = vld [vmem:[%s903 + $0xd8] sm:$0xf]
        %v913 = vld [vmem:[%s903 + $0xdc] sm:$0xf]
        %v914 = vld [vmem:[%s903 + $0xe0] sm:$0xf]
        %v915 = vld [vmem:[%s903 + $0xe4] sm:$0xf]
        %v916 = vld [vmem:[%s903 + $0xe8] sm:$0xf]
        %v917 = vld [vmem:[%s903 + $0xec] sm:$0xf]
        %v918 = vld [vmem:[%s903 + $0xf0] sm:$0xf]
        %v919 = vld [vmem:[%s903 + $0xf4] sm:$0xf]
        %s920 = scalar_lea.vmem [#allocation5], 192
        %v921 = vld [vmem:[%s920] sm:$0xf]
        %v922 = vld [vmem:[%s920 + $0x4] sm:$0xf]
        %v923 = vld [vmem:[%s920 + $0x8] sm:$0xf]
        %v924 = vld [vmem:[%s920 + $0xc] sm:$0xf]
        %v925 = vld [vmem:[%s920 + $0x10] sm:$0xf]
        %v926 = vld [vmem:[%s920 + $0x14] sm:$0xf]
        %v927 = vld [vmem:[%s920 + $0x18] sm:$0xf]
        %v928 = vld [vmem:[%s920 + $0x1c] sm:$0xf]
        %v929 = vld [vmem:[%s920 + $0x20] sm:$0xf]
        %v930 = vld [vmem:[%s920 + $0x24] sm:$0xf]
        %v931 = vld [vmem:[%s920 + $0x28] sm:$0xf]
        %v932 = vld [vmem:[%s920 + $0x2c] sm:$0xf]
        %v933 = vld [vmem:[%s920 + $0x30] sm:$0xf]
        %v934 = vld [vmem:[%s920 + $0x34] sm:$0xf]
        %v935 = vld [vmem:[%s920 + $0x38] sm:$0xf]
        %v936 = vld [vmem:[%s920 + $0x3c] sm:$0xf]
        %v953 = vunpack.c.l.b16 %v904
        %v954 = vunpack.c.l.b16 %v905
        %v955 = vunpack.c.l.b16 %v906
        %v956 = vunpack.c.l.b16 %v907
        %v957 = vunpack.c.l.b16 %v908
        %v958 = vunpack.c.l.b16 %v909
        %v959 = vunpack.c.l.b16 %v910
        %v960 = vunpack.c.l.b16 %v911
        %v961 = vunpack.c.l.b16 %v912
        %v962 = vunpack.c.l.b16 %v913
        %v963 = vunpack.c.l.b16 %v914
        %v964 = vunpack.c.l.b16 %v915
        %v965 = vunpack.c.l.b16 %v916
        %v966 = vunpack.c.l.b16 %v917
        %v967 = vunpack.c.l.b16 %v918
        %v968 = vunpack.c.l.b16 %v919
        %v969 = vpack.c.b16 %v954, %v953
        %v970 = vpack.c.b16 %v956, %v955
        %v971 = vpack.c.b16 %v958, %v957
        %v972 = vpack.c.b16 %v960, %v959
        %v973 = vpack.c.b16 %v962, %v961
        %v974 = vpack.c.b16 %v964, %v963
        %v975 = vpack.c.b16 %v966, %v965
        %v976 = vpack.c.b16 %v968, %v967
        %v1001 = vunpack.c.l.b16 %v921
        %v1002 = vunpack.c.l.b16 %v922
        %v1003 = vunpack.c.l.b16 %v923
        %v1004 = vunpack.c.l.b16 %v924
        %v1005 = vunpack.c.l.b16 %v925
        %v1006 = vunpack.c.l.b16 %v926
        %v1007 = vunpack.c.l.b16 %v927
        %v1008 = vunpack.c.l.b16 %v928
        %v1009 = vunpack.c.l.b16 %v929
        %v1010 = vunpack.c.l.b16 %v930
        %v1011 = vunpack.c.l.b16 %v931
        %v1012 = vunpack.c.l.b16 %v932
        %v1013 = vunpack.c.l.b16 %v933
        %v1014 = vunpack.c.l.b16 %v934
        %v1015 = vunpack.c.l.b16 %v935
        %v1016 = vunpack.c.l.b16 %v936
        %v1017 = vpack.c.b16 %v1002, %v1001
        %v1018 = vpack.c.b16 %v1004, %v1003
        %v1019 = vpack.c.b16 %v1006, %v1005
        %v1020 = vpack.c.b16 %v1008, %v1007
        %v1021 = vpack.c.b16 %v1010, %v1009
        %v1022 = vpack.c.b16 %v1012, %v1011
        %v1023 = vpack.c.b16 %v1014, %v1013
        %v1024 = vpack.c.b16 %v1016, %v1015
        %1033 = vmatprep.subr.bf16.mxu0 0
        %1034 = vmatpush1.bf16.msra.mxu0 %v1017
        %1035 = vmatprep.subr.bf16.mxu0 0
        %1036 = vmatpush1.bf16.msra.mxu0 %v1018
        %1037 = vmatprep.subr.bf16.mxu0 0
        %1038 = vmatpush1.bf16.msra.mxu0 %v1019
        %1039 = vmatprep.subr.bf16.mxu0 0
        %1040 = vmatpush1.bf16.msra.mxu0 %v1020
        %1041 = vmatprep.subr.bf16.mxu0 0
        %1042 = vmatpush1.bf16.msra.mxu0 %v1021
        %1043 = vmatprep.subr.bf16.mxu0 0
        %1044 = vmatpush1.bf16.msra.mxu0 %v1022
        %1045 = vmatprep.subr.bf16.mxu0 0
        %1046 = vmatpush1.bf16.msra.mxu0 %v1023
        %1047 = vmatprep.subr.bf16.mxu0 0
        %1048 = vmatpush1.bf16.msra.mxu0 %v1024
        %1049 = vmatprep.subr.bf16.mxu0 0
        %1050 = vmatpush1.bf16.msra.mxu0 0
        %1051 = vmatprep.subr.bf16.mxu0 0
        %1052 = vmatpush1.bf16.msra.mxu0 0
        %1053 = vmatprep.subr.bf16.mxu0 0
        %1054 = vmatpush1.bf16.msra.mxu0 0
        %1055 = vmatprep.subr.bf16.mxu0 0
        %1056 = vmatpush1.bf16.msra.mxu0 0
        %1057 = vmatprep.subr.bf16.mxu0 0
        %1058 = vmatpush1.bf16.msra.mxu0 0
        %1059 = vmatprep.subr.bf16.mxu0 0
        %1060 = vmatpush1.bf16.msra.mxu0 0
        %1061 = vmatprep.subr.bf16.mxu0 0
        %1062 = vmatpush1.bf16.msra.mxu0 0
        %1063 = vmatprep.subr.bf16.mxu0 0
        %1064 = vmatpush1.bf16.msra.mxu0 0
        %1065 = vmatprep.mubr.bf16.mxu0 0
        %1066 = vmatmul.mubr.bf16.gmra.mrb[0].mxu0 %v969
        %v1067 = vpop.f32.mrb[0].mxu0
        %v1068 = vadd.f32 0.0, %v1067
        %v1069 = vpop.f32.mrb[0].mxu0
        %v1070 = vpop.f32.mrb[0].mxu0
        %v1071 = vadd.f32 0.0, %v1070
        %v1072 = vpop.f32.mrb[0].mxu0
        %1073 = vmatprep.mubr.bf16.mxu0 0
        %1074 = vmatmul.mubr.bf16.gmra.mrb[0].mxu0 %v970
        %v1075 = vpop.f32.mrb[0].mxu0
        %v1076 = vadd.f32 0.0, %v1075
        %v1077 = vpop.f32.mrb[0].mxu0
        %v1078 = vpop.f32.mrb[0].mxu0
        %v1079 = vadd.f32 0.0, %v1078
        %v1080 = vpop.f32.mrb[0].mxu0
        %1081 = vmatprep.mubr.bf16.mxu0 0
        %1082 = vmatmul.mubr.bf16.gmra.mrb[0].mxu0 %v971
        %v1083 = vpop.f32.mrb[0].mxu0
        %v1084 = vadd.f32 0.0, %v1083
        %v1085 = vpop.f32.mrb[0].mxu0
        %v1086 = vpop.f32.mrb[0].mxu0
        %v1087 = vadd.f32 0.0, %v1086
        %v1088 = vpop.f32.mrb[0].mxu0
        %1089 = vmatprep.mubr.bf16.mxu0 0
        %1090 = vmatmul.mubr.bf16.gmra.mrb[0].mxu0 %v972
        %v1091 = vpop.f32.mrb[0].mxu0
        %v1092 = vadd.f32 0.0, %v1091
        %v1093 = vpop.f32.mrb[0].mxu0
        %v1094 = vpop.f32.mrb[0].mxu0
        %v1095 = vadd.f32 0.0, %v1094
        %v1096 = vpop.f32.mrb[0].mxu0
        %1097 = vmatprep.mubr.bf16.mxu0 0
        %1098 = vmatmul.mubr.bf16.gmra.mrb[0].mxu0 %v973
        %v1099 = vpop.f32.mrb[0].mxu0
        %v1100 = vadd.f32 0.0, %v1099
        %v1101 = vpop.f32.mrb[0].mxu0
        %v1102 = vpop.f32.mrb[0].mxu0
        %v1103 = vadd.f32 0.0, %v1102
        %v1104 = vpop.f32.mrb[0].mxu0
        %1105 = vmatprep.mubr.bf16.mxu0 0
        %1106 = vmatmul.mubr.bf16.gmra.mrb[0].mxu0 %v974
        %v1107 = vpop.f32.mrb[0].mxu0
        %v1108 = vadd.f32 0.0, %v1107
        %v1109 = vpop.f32.mrb[0].mxu0
        %v1110 = vpop.f32.mrb[0].mxu0
        %v1111 = vadd.f32 0.0, %v1110
        %v1112 = vpop.f32.mrb[0].mxu0
        %1113 = vmatprep.mubr.bf16.mxu0 0
        %1114 = vmatmul.mubr.bf16.gmra.mrb[0].mxu0 %v975
        %v1115 = vpop.f32.mrb[0].mxu0
        %v1116 = vadd.f32 0.0, %v1115
        %v1117 = vpop.f32.mrb[0].mxu0
        %v1118 = vpop.f32.mrb[0].mxu0
        %v1119 = vadd.f32 0.0, %v1118
        %v1120 = vpop.f32.mrb[0].mxu0
        %1121 = vmatprep.mubr.bf16.mxu0 0
        %1122 = vmatmul.mubr.bf16.gmra.mrb[0].mxu0 %v976
        %v1123 = vpop.f32.mrb[0].mxu0
        %v1124 = vadd.f32 0.0, %v1123
        %v1125 = vpop.f32.mrb[0].mxu0
        %v1126 = vpop.f32.mrb[0].mxu0
        %v1127 = vadd.f32 0.0, %v1126
        %v1128 = vpop.f32.mrb[0].mxu0
        %1129 = vdwg.mxu0
        %v1130 = vadd.f32 %v887, %v1068
        %v1131 = vadd.f32 %v888, %v1071
        %v1132 = vadd.f32 %v889, %v1076
        %v1133 = vadd.f32 %v890, %v1079
        %v1134 = vadd.f32 %v891, %v1084
        %v1135 = vadd.f32 %v892, %v1087
        %v1136 = vadd.f32 %v893, %v1092
        %v1137 = vadd.f32 %v894, %v1095
        %v1138 = vadd.f32 %v895, %v1100
        %v1139 = vadd.f32 %v896, %v1103
        %v1140 = vadd.f32 %v897, %v1108
        %v1141 = vadd.f32 %v898, %v1111
        %v1142 = vadd.f32 %v899, %v1116
        %v1143 = vadd.f32 %v900, %v1119
        %v1144 = vadd.f32 %v901, %v1124
        %v1145 = vadd.f32 %v902, %v1127
        %s1146 = scalar_lea.vmem %s178, 144 [#allocation2]
        %v1147 = vld [vmem:[%s1146] sm:$0xf]
        %v1148 = vld [vmem:[%s1146 + $0x4] sm:$0xf]
        %v1149 = vld [vmem:[%s1146 + $0x8] sm:$0xf]
        %v1150 = vld [vmem:[%s1146 + $0xc] sm:$0xf]
        %v1151 = vld [vmem:[%s1146 + $0x10] sm:$0xf]
        %v1152 = vld [vmem:[%s1146 + $0x14] sm:$0xf]
        %v1153 = vld [vmem:[%s1146 + $0x18] sm:$0xf]
        %v1154 = vld [vmem:[%s1146 + $0x1c] sm:$0xf]
        %v1155 = vld [vmem:[%s1146 + $0xd8] sm:$0xf]
        %v1156 = vld [vmem:[%s1146 + $0xdc] sm:$0xf]
        %v1157 = vld [vmem:[%s1146 + $0xe0] sm:$0xf]
        %v1158 = vld [vmem:[%s1146 + $0xe4] sm:$0xf]
        %v1159 = vld [vmem:[%s1146 + $0xe8] sm:$0xf]
        %v1160 = vld [vmem:[%s1146 + $0xec] sm:$0xf]
        %v1161 = vld [vmem:[%s1146 + $0xf0] sm:$0xf]
        %v1162 = vld [vmem:[%s1146 + $0xf4] sm:$0xf]
        %s1163 = scalar_lea.vmem [#allocation5], 256
        %v1164 = vld [vmem:[%s1163] sm:$0xf]
        %v1165 = vld [vmem:[%s1163 + $0x4] sm:$0xf]
        %v1166 = vld [vmem:[%s1163 + $0x8] sm:$0xf]
        %v1167 = vld [vmem:[%s1163 + $0xc] sm:$0xf]
        %v1168 = vld [vmem:[%s1163 + $0x10] sm:$0xf]
        %v1169 = vld [vmem:[%s1163 + $0x14] sm:$0xf]
        %v1170 = vld [vmem:[%s1163 + $0x18] sm:$0xf]
        %v1171 = vld [vmem:[%s1163 + $0x1c] sm:$0xf]
        %v1172 = vld [vmem:[%s1163 + $0x20] sm:$0xf]
        %v1173 = vld [vmem:[%s1163 + $0x24] sm:$0xf]
        %v1174 = vld [vmem:[%s1163 + $0x28] sm:$0xf]
        %v1175 = vld [vmem:[%s1163 + $0x2c] sm:$0xf]
        %v1176 = vld [vmem:[%s1163 + $0x30] sm:$0xf]
        %v1177 = vld [vmem:[%s1163 + $0x34] sm:$0xf]
        %v1178 = vld [vmem:[%s1163 + $0x38] sm:$0xf]
        %v1179 = vld [vmem:[%s1163 + $0x3c] sm:$0xf]
        %v1196 = vunpack.c.l.b16 %v1147
        %v1197 = vunpack.c.l.b16 %v1148
        %v1198 = vunpack.c.l.b16 %v1149
        %v1199 = vunpack.c.l.b16 %v1150
        %v1200 = vunpack.c.l.b16 %v1151
        %v1201 = vunpack.c.l.b16 %v1152
        %v1202 = vunpack.c.l.b16 %v1153
        %v1203 = vunpack.c.l.b16 %v1154
        %v1204 = vunpack.c.l.b16 %v1155
        %v1205 = vunpack.c.l.b16 %v1156
        %v1206 = vunpack.c.l.b16 %v1157
        %v1207 = vunpack.c.l.b16 %v1158
        %v1208 = vunpack.c.l.b16 %v1159
        %v1209 = vunpack.c.l.b16 %v1160
        %v1210 = vunpack.c.l.b16 %v1161
        %v1211 = vunpack.c.l.b16 %v1162
        %v1212 = vpack.c.b16 %v1197, %v1196
        %v1213 = vpack.c.b16 %v1199, %v1198
        %v1214 = vpack.c.b16 %v1201, %v1200
        %v1215 = vpack.c.b16 %v1203, %v1202
        %v1216 = vpack.c.b16 %v1205, %v1204
        %v1217 = vpack.c.b16 %v1207, %v1206
        %v1218 = vpack.c.b16 %v1209, %v1208
        %v1219 = vpack.c.b16 %v1211, %v1210
        %v1244 = vunpack.c.l.b16 %v1164
        %v1245 = vunpack.c.l.b16 %v1165
        %v1246 = vunpack.c.l.b16 %v1166
        %v1247 = vunpack.c.l.b16 %v1167
        %v1248 = vunpack.c.l.b16 %v1168
        %v1249 = vunpack.c.l.b16 %v1169
        %v1250 = vunpack.c.l.b16 %v1170
        %v1251 = vunpack.c.l.b16 %v1171
        %v1252 = vunpack.c.l.b16 %v1172
        %v1253 = vunpack.c.l.b16 %v1173
        %v1254 = vunpack.c.l.b16 %v1174
        %v1255 = vunpack.c.l.b16 %v1175
        %v1256 = vunpack.c.l.b16 %v1176
        %v1257 = vunpack.c.l.b16 %v1177
        %v1258 = vunpack.c.l.b16 %v1178
        %v1259 = vunpack.c.l.b16 %v1179
        %v1260 = vpack.c.b16 %v1245, %v1244
        %v1261 = vpack.c.b16 %v1247, %v1246
        %v1262 = vpack.c.b16 %v1249, %v1248
        %v1263 = vpack.c.b16 %v1251, %v1250
        %v1264 = vpack.c.b16 %v1253, %v1252
        %v1265 = vpack.c.b16 %v1255, %v1254
        %v1266 = vpack.c.b16 %v1257, %v1256
        %v1267 = vpack.c.b16 %v1259, %v1258
        %1276 = vmatprep.subr.bf16.mxu0 0
        %1277 = vmatpush1.bf16.msra.mxu0 %v1260
        %1278 = vmatprep.subr.bf16.mxu0 0
        %1279 = vmatpush1.bf16.msra.mxu0 %v1261
        %1280 = vmatprep.subr.bf16.mxu0 0
        %1281 = vmatpush1.bf16.msra.mxu0 %v1262
        %1282 = vmatprep.subr.bf16.mxu0 0
        %1283 = vmatpush1.bf16.msra.mxu0 %v1263
        %1284 = vmatprep.subr.bf16.mxu0 0
        %1285 = vmatpush1.bf16.msra.mxu0 %v1264
        %1286 = vmatprep.subr.bf16.mxu0 0
        %1287 = vmatpush1.bf16.msra.mxu0 %v1265
        %1288 = vmatprep.subr.bf16.mxu0 0
        %1289 = vmatpush1.bf16.msra.mxu0 %v1266
        %1290 = vmatprep.subr.bf16.mxu0 0
        %1291 = vmatpush1.bf16.msra.mxu0 %v1267
        %1292 = vmatprep.subr.bf16.mxu0 0
        %1293 = vmatpush1.bf16.msra.mxu0 0
        %1294 = vmatprep.subr.bf16.mxu0 0
        %1295 = vmatpush1.bf16.msra.mxu0 0
        %1296 = vmatprep.subr.bf16.mxu0 0
        %1297 = vmatpush1.bf16.msra.mxu0 0
        %1298 = vmatprep.subr.bf16.mxu0 0
        %1299 = vmatpush1.bf16.msra.mxu0 0
        %1300 = vmatprep.subr.bf16.mxu0 0
        %1301 = vmatpush1.bf16.msra.mxu0 0
        %1302 = vmatprep.subr.bf16.mxu0 0
        %1303 = vmatpush1.bf16.msra.mxu0 0
        %1304 = vmatprep.subr.bf16.mxu0 0
        %1305 = vmatpush1.bf16.msra.mxu0 0
        %1306 = vmatprep.subr.bf16.mxu0 0
        %1307 = vmatpush1.bf16.msra.mxu0 0
        %1308 = vmatprep.mubr.bf16.mxu0 0
        %1309 = vmatmul.mubr.bf16.gmra.mrb[0].mxu0 %v1212
        %v1310 = vpop.f32.mrb[0].mxu0
        %v1311 = vadd.f32 0.0, %v1310
        %v1312 = vpop.f32.mrb[0].mxu0
        %v1313 = vpop.f32.mrb[0].mxu0
        %v1314 = vadd.f32 0.0, %v1313
        %v1315 = vpop.f32.mrb[0].mxu0
        %1316 = vmatprep.mubr.bf16.mxu0 0
        %1317 = vmatmul.mubr.bf16.gmra.mrb[0].mxu0 %v1213
        %v1318 = vpop.f32.mrb[0].mxu0
        %v1319 = vadd.f32 0.0, %v1318
        %v1320 = vpop.f32.mrb[0].mxu0
        %v1321 = vpop.f32.mrb[0].mxu0
        %v1322 = vadd.f32 0.0, %v1321
        %v1323 = vpop.f32.mrb[0].mxu0
        %1324 = vmatprep.mubr.bf16.mxu0 0
        %1325 = vmatmul.mubr.bf16.gmra.mrb[0].mxu0 %v1214
        %v1326 = vpop.f32.mrb[0].mxu0
        %v1327 = vadd.f32 0.0, %v1326
        %v1328 = vpop.f32.mrb[0].mxu0
        %v1329 = vpop.f32.mrb[0].mxu0
        %v1330 = vadd.f32 0.0, %v1329
        %v1331 = vpop.f32.mrb[0].mxu0
        %1332 = vmatprep.mubr.bf16.mxu0 0
        %1333 = vmatmul.mubr.bf16.gmra.mrb[0].mxu0 %v1215
        %v1334 = vpop.f32.mrb[0].mxu0
        %v1335 = vadd.f32 0.0, %v1334
        %v1336 = vpop.f32.mrb[0].mxu0
        %v1337 = vpop.f32.mrb[0].mxu0
        %v1338 = vadd.f32 0.0, %v1337
        %v1339 = vpop.f32.mrb[0].mxu0
        %1340 = vmatprep.mubr.bf16.mxu0 0
        %1341 = vmatmul.mubr.bf16.gmra.mrb[0].mxu0 %v1216
        %v1342 = vpop.f32.mrb[0].mxu0
        %v1343 = vadd.f32 0.0, %v1342
        %v1344 = vpop.f32.mrb[0].mxu0
        %v1345 = vpop.f32.mrb[0].mxu0
        %v1346 = vadd.f32 0.0, %v1345
        %v1347 = vpop.f32.mrb[0].mxu0
        %1348 = vmatprep.mubr.bf16.mxu0 0
        %1349 = vmatmul.mubr.bf16.gmra.mrb[0].mxu0 %v1217
        %v1350 = vpop.f32.mrb[0].mxu0
        %v1351 = vadd.f32 0.0, %v1350
        %v1352 = vpop.f32.mrb[0].mxu0
        %v1353 = vpop.f32.mrb[0].mxu0
        %v1354 = vadd.f32 0.0, %v1353
        %v1355 = vpop.f32.mrb[0].mxu0
        %1356 = vmatprep.mubr.bf16.mxu0 0
        %1357 = vmatmul.mubr.bf16.gmra.mrb[0].mxu0 %v1218
        %v1358 = vpop.f32.mrb[0].mxu0
        %v1359 = vadd.f32 0.0, %v1358
        %v1360 = vpop.f32.mrb[0].mxu0
        %v1361 = vpop.f32.mrb[0].mxu0
        %v1362 = vadd.f32 0.0, %v1361
        %v1363 = vpop.f32.mrb[0].mxu0
        %1364 = vmatprep.mubr.bf16.mxu0 0
        %1365 = vmatmul.mubr.bf16.gmra.mrb[0].mxu0 %v1219
        %v1366 = vpop.f32.mrb[0].mxu0
        %v1367 = vadd.f32 0.0, %v1366
        %v1368 = vpop.f32.mrb[0].mxu0
        %v1369 = vpop.f32.mrb[0].mxu0
        %v1370 = vadd.f32 0.0, %v1369
        %v1371 = vpop.f32.mrb[0].mxu0
        %1372 = vdwg.mxu0
        %v1373 = vadd.f32 %v1130, %v1311
        %v1374 = vadd.f32 %v1131, %v1314
        %v1375 = vadd.f32 %v1132, %v1319
        %v1376 = vadd.f32 %v1133, %v1322
        %v1377 = vadd.f32 %v1134, %v1327
        %v1378 = vadd.f32 %v1135, %v1330
        %v1379 = vadd.f32 %v1136, %v1335
        %v1380 = vadd.f32 %v1137, %v1338
        %v1381 = vadd.f32 %v1138, %v1343
        %v1382 = vadd.f32 %v1139, %v1346
        %v1383 = vadd.f32 %v1140, %v1351
        %v1384 = vadd.f32 %v1141, %v1354
        %v1385 = vadd.f32 %v1142, %v1359
        %v1386 = vadd.f32 %v1143, %v1362
        %v1387 = vadd.f32 %v1144, %v1367
        %v1388 = vadd.f32 %v1145, %v1370
        %s1389 = scalar_lea.vmem %s178, 180 [#allocation2]
        %v1390 = vld [vmem:[%s1389] sm:$0xf]
        %v1391 = vld [vmem:[%s1389 + $0x4] sm:$0xf]
        %v1392 = vld [vmem:[%s1389 + $0x8] sm:$0xf]
        %v1393 = vld [vmem:[%s1389 + $0xc] sm:$0xf]
        %v1394 = vld [vmem:[%s1389 + $0x10] sm:$0xf]
        %v1395 = vld [vmem:[%s1389 + $0x14] sm:$0xf]
        %v1396 = vld [vmem:[%s1389 + $0x18] sm:$0xf]
        %v1397 = vld [vmem:[%s1389 + $0x1c] sm:$0xf]
        %v1398 = vld [vmem:[%s1389 + $0xd8] sm:$0xf]
        %v1399 = vld [vmem:[%s1389 + $0xdc] sm:$0xf]
        %v1400 = vld [vmem:[%s1389 + $0xe0] sm:$0xf]
        %v1401 = vld [vmem:[%s1389 + $0xe4] sm:$0xf]
        %v1402 = vld [vmem:[%s1389 + $0xe8] sm:$0xf]
        %v1403 = vld [vmem:[%s1389 + $0xec] sm:$0xf]
        %v1404 = vld [vmem:[%s1389 + $0xf0] sm:$0xf]
        %v1405 = vld [vmem:[%s1389 + $0xf4] sm:$0xf]
        %s1406 = scalar_lea.vmem [#allocation5], 320
        %v1407 = vld [vmem:[%s1406] sm:$0xf]
        %v1408 = vld [vmem:[%s1406 + $0x4] sm:$0xf]
        %v1409 = vld [vmem:[%s1406 + $0x8] sm:$0xf]
        %v1410 = vld [vmem:[%s1406 + $0xc] sm:$0xf]
        %v1411 = vld [vmem:[%s1406 + $0x10] sm:$0xf]
        %v1412 = vld [vmem:[%s1406 + $0x14] sm:$0xf]
        %v1413 = vld [vmem:[%s1406 + $0x18] sm:$0xf]
        %v1414 = vld [vmem:[%s1406 + $0x1c] sm:$0xf]
        %v1415 = vld [vmem:[%s1406 + $0x20] sm:$0xf]
        %v1416 = vld [vmem:[%s1406 + $0x24] sm:$0xf]
        %v1417 = vld [vmem:[%s1406 + $0x28] sm:$0xf]
        %v1418 = vld [vmem:[%s1406 + $0x2c] sm:$0xf]
        %v1419 = vld [vmem:[%s1406 + $0x30] sm:$0xf]
        %v1420 = vld [vmem:[%s1406 + $0x34] sm:$0xf]
        %v1421 = vld [vmem:[%s1406 + $0x38] sm:$0xf]
        %v1422 = vld [vmem:[%s1406 + $0x3c] sm:$0xf]
        %v1439 = vunpack.c.l.b16 %v1390
        %v1440 = vunpack.c.l.b16 %v1391
        %v1441 = vunpack.c.l.b16 %v1392
        %v1442 = vunpack.c.l.b16 %v1393
        %v1443 = vunpack.c.l.b16 %v1394
        %v1444 = vunpack.c.l.b16 %v1395
        %v1445 = vunpack.c.l.b16 %v1396
        %v1446 = vunpack.c.l.b16 %v1397
        %v1447 = vunpack.c.l.b16 %v1398
        %v1448 = vunpack.c.l.b16 %v1399
        %v1449 = vunpack.c.l.b16 %v1400
        %v1450 = vunpack.c.l.b16 %v1401
        %v1451 = vunpack.c.l.b16 %v1402
        %v1452 = vunpack.c.l.b16 %v1403
        %v1453 = vunpack.c.l.b16 %v1404
        %v1454 = vunpack.c.l.b16 %v1405
        %v1455 = vpack.c.b16 %v1440, %v1439
        %v1456 = vpack.c.b16 %v1442, %v1441
        %v1457 = vpack.c.b16 %v1444, %v1443
        %v1458 = vpack.c.b16 %v1446, %v1445
        %v1459 = vpack.c.b16 %v1448, %v1447
        %v1460 = vpack.c.b16 %v1450, %v1449
        %v1461 = vpack.c.b16 %v1452, %v1451
        %v1462 = vpack.c.b16 %v1454, %v1453
        %v1487 = vunpack.c.l.b16 %v1407
        %v1488 = vunpack.c.l.b16 %v1408
        %v1489 = vunpack.c.l.b16 %v1409
        %v1490 = vunpack.c.l.b16 %v1410
        %v1491 = vunpack.c.l.b16 %v1411
        %v1492 = vunpack.c.l.b16 %v1412
        %v1493 = vunpack.c.l.b16 %v1413
        %v1494 = vunpack.c.l.b16 %v1414
        %v1495 = vunpack.c.l.b16 %v1415
        %v1496 = vunpack.c.l.b16 %v1416
        %v1497 = vunpack.c.l.b16 %v1417
        %v1498 = vunpack.c.l.b16 %v1418
        %v1499 = vunpack.c.l.b16 %v1419
        %v1500 = vunpack.c.l.b16 %v1420
        %v1501 = vunpack.c.l.b16 %v1421
        %v1502 = vunpack.c.l.b16 %v1422
        %v1503 = vpack.c.b16 %v1488, %v1487
        %v1504 = vpack.c.b16 %v1490, %v1489
        %v1505 = vpack.c.b16 %v1492, %v1491
        %v1506 = vpack.c.b16 %v1494, %v1493
        %v1507 = vpack.c.b16 %v1496, %v1495
        %v1508 = vpack.c.b16 %v1498, %v1497
        %v1509 = vpack.c.b16 %v1500, %v1499
        %v1510 = vpack.c.b16 %v1502, %v1501
        %1519 = vmatprep.subr.bf16.mxu0 0
        %1520 = vmatpush1.bf16.msra.mxu0 %v1503
        %1521 = vmatprep.subr.bf16.mxu0 0
        %1522 = vmatpush1.bf16.msra.mxu0 %v1504
        %1523 = vmatprep.subr.bf16.mxu0 0
        %1524 = vmatpush1.bf16.msra.mxu0 %v1505
        %1525 = vmatprep.subr.bf16.mxu0 0
        %1526 = vmatpush1.bf16.msra.mxu0 %v1506
        %1527 = vmatprep.subr.bf16.mxu0 0
        %1528 = vmatpush1.bf16.msra.mxu0 %v1507
        %1529 = vmatprep.subr.bf16.mxu0 0
        %1530 = vmatpush1.bf16.msra.mxu0 %v1508
        %1531 = vmatprep.subr.bf16.mxu0 0
        %1532 = vmatpush1.bf16.msra.mxu0 %v1509
        %1533 = vmatprep.subr.bf16.mxu0 0
        %1534 = vmatpush1.bf16.msra.mxu0 %v1510
        %1535 = vmatprep.subr.bf16.mxu0 0
        %1536 = vmatpush1.bf16.msra.mxu0 0
        %1537 = vmatprep.subr.bf16.mxu0 0
        %1538 = vmatpush1.bf16.msra.mxu0 0
        %1539 = vmatprep.subr.bf16.mxu0 0
        %1540 = vmatpush1.bf16.msra.mxu0 0
        %1541 = vmatprep.subr.bf16.mxu0 0
        %1542 = vmatpush1.bf16.msra.mxu0 0
        %1543 = vmatprep.subr.bf16.mxu0 0
        %1544 = vmatpush1.bf16.msra.mxu0 0
        %1545 = vmatprep.subr.bf16.mxu0 0
        %1546 = vmatpush1.bf16.msra.mxu0 0
        %1547 = vmatprep.subr.bf16.mxu0 0
        %1548 = vmatpush1.bf16.msra.mxu0 0
        %1549 = vmatprep.subr.bf16.mxu0 0
        %1550 = vmatpush1.bf16.msra.mxu0 0
        %1551 = vmatprep.mubr.bf16.mxu0 0
        %1552 = vmatmul.mubr.bf16.gmra.mrb[0].mxu0 %v1455
        %v1553 = vpop.f32.mrb[0].mxu0
        %v1554 = vadd.f32 0.0, %v1553
        %v1555 = vpop.f32.mrb[0].mxu0
        %v1556 = vpop.f32.mrb[0].mxu0
        %v1557 = vadd.f32 0.0, %v1556
        %v1558 = vpop.f32.mrb[0].mxu0
        %1559 = vmatprep.mubr.bf16.mxu0 0
        %1560 = vmatmul.mubr.bf16.gmra.mrb[0].mxu0 %v1456
        %v1561 = vpop.f32.mrb[0].mxu0
        %v1562 = vadd.f32 0.0, %v1561
        %v1563 = vpop.f32.mrb[0].mxu0
        %v1564 = vpop.f32.mrb[0].mxu0
        %v1565 = vadd.f32 0.0, %v1564
        %v1566 = vpop.f32.mrb[0].mxu0
        %1567 = vmatprep.mubr.bf16.mxu0 0
        %1568 = vmatmul.mubr.bf16.gmra.mrb[0].mxu0 %v1457
        %v1569 = vpop.f32.mrb[0].mxu0
        %v1570 = vadd.f32 0.0, %v1569
        %v1571 = vpop.f32.mrb[0].mxu0
        %v1572 = vpop.f32.mrb[0].mxu0
        %v1573 = vadd.f32 0.0, %v1572
        %v1574 = vpop.f32.mrb[0].mxu0
        %1575 = vmatprep.mubr.bf16.mxu0 0
        %1576 = vmatmul.mubr.bf16.gmra.mrb[0].mxu0 %v1458
        %v1577 = vpop.f32.mrb[0].mxu0
        %v1578 = vadd.f32 0.0, %v1577
        %v1579 = vpop.f32.mrb[0].mxu0
        %v1580 = vpop.f32.mrb[0].mxu0
        %v1581 = vadd.f32 0.0, %v1580
        %v1582 = vpop.f32.mrb[0].mxu0
        %1583 = vmatprep.mubr.bf16.mxu0 0
        %1584 = vmatmul.mubr.bf16.gmra.mrb[0].mxu0 %v1459
        %v1585 = vpop.f32.mrb[0].mxu0
        %v1586 = vadd.f32 0.0, %v1585
        %v1587 = vpop.f32.mrb[0].mxu0
        %v1588 = vpop.f32.mrb[0].mxu0
        %v1589 = vadd.f32 0.0, %v1588
        %v1590 = vpop.f32.mrb[0].mxu0
        %1591 = vmatprep.mubr.bf16.mxu0 0
        %1592 = vmatmul.mubr.bf16.gmra.mrb[0].mxu0 %v1460
        %v1593 = vpop.f32.mrb[0].mxu0
        %v1594 = vadd.f32 0.0, %v1593
        %v1595 = vpop.f32.mrb[0].mxu0
        %v1596 = vpop.f32.mrb[0].mxu0
        %v1597 = vadd.f32 0.0, %v1596
        %v1598 = vpop.f32.mrb[0].mxu0
        %1599 = vmatprep.mubr.bf16.mxu0 0
        %1600 = vmatmul.mubr.bf16.gmra.mrb[0].mxu0 %v1461
        %v1601 = vpop.f32.mrb[0].mxu0
        %v1602 = vadd.f32 0.0, %v1601
        %v1603 = vpop.f32.mrb[0].mxu0
        %v1604 = vpop.f32.mrb[0].mxu0
        %v1605 = vadd.f32 0.0, %v1604
        %v1606 = vpop.f32.mrb[0].mxu0
        %1607 = vmatprep.mubr.bf16.mxu0 0
        %1608 = vmatmul.mubr.bf16.gmra.mrb[0].mxu0 %v1462
        %v1609 = vpop.f32.mrb[0].mxu0
        %v1610 = vadd.f32 0.0, %v1609
        %v1611 = vpop.f32.mrb[0].mxu0
        %v1612 = vpop.f32.mrb[0].mxu0
        %v1613 = vadd.f32 0.0, %v1612
        %v1614 = vpop.f32.mrb[0].mxu0
        %1615 = vdwg.mxu0
        %v1616 = vadd.f32 %v1373, %v1554
        %v1617 = vadd.f32 %v1374, %v1557
        %v1618 = vadd.f32 %v1375, %v1562
        %v1619 = vadd.f32 %v1376, %v1565
        %v1620 = vadd.f32 %v1377, %v1570
        %v1621 = vadd.f32 %v1378, %v1573
        %v1622 = vadd.f32 %v1379, %v1578
        %v1623 = vadd.f32 %v1380, %v1581
        %v1624 = vadd.f32 %v1381, %v1586
        %v1625 = vadd.f32 %v1382, %v1589
        %v1626 = vadd.f32 %v1383, %v1594
        %v1627 = vadd.f32 %v1384, %v1597
        %v1628 = vadd.f32 %v1385, %v1602
        %v1629 = vadd.f32 %v1386, %v1605
        %v1630 = vadd.f32 %v1387, %v1610
        %v1631 = vadd.f32 %v1388, %v1613
        %s1632 = scalar_lea.vmem %s178, 4 [#allocation2]
        %v1633 = vld [vmem:[%s1632] sm:$0xf]
        %v1634 = vld [vmem:[%s1632 + $0x4] sm:$0xf]
        %v1635 = vld [vmem:[%s1632 + $0x8] sm:$0xf]
        %v1636 = vld [vmem:[%s1632 + $0xc] sm:$0xf]
        %v1637 = vld [vmem:[%s1632 + $0x10] sm:$0xf]
        %v1638 = vld [vmem:[%s1632 + $0x14] sm:$0xf]
        %v1639 = vld [vmem:[%s1632 + $0x18] sm:$0xf]
        %v1640 = vld [vmem:[%s1632 + $0x1c] sm:$0xf]
        %v1641 = vld [vmem:[%s1632 + $0xd8] sm:$0xf]
        %v1642 = vld [vmem:[%s1632 + $0xdc] sm:$0xf]
        %v1643 = vld [vmem:[%s1632 + $0xe0] sm:$0xf]
        %v1644 = vld [vmem:[%s1632 + $0xe4] sm:$0xf]
        %v1645 = vld [vmem:[%s1632 + $0xe8] sm:$0xf]
        %v1646 = vld [vmem:[%s1632 + $0xec] sm:$0xf]
        %v1647 = vld [vmem:[%s1632 + $0xf0] sm:$0xf]
        %v1648 = vld [vmem:[%s1632 + $0xf4] sm:$0xf]
        %s1649 = scalar_lea.vmem [#allocation5], 384
        %v1650 = vld [vmem:[%s1649] sm:$0xf]
        %v1651 = vld [vmem:[%s1649 + $0x4] sm:$0xf]
        %v1652 = vld [vmem:[%s1649 + $0x8] sm:$0xf]
        %v1653 = vld [vmem:[%s1649 + $0xc] sm:$0xf]
        %v1654 = vld [vmem:[%s1649 + $0x10] sm:$0xf]
        %v1655 = vld [vmem:[%s1649 + $0x14] sm:$0xf]
        %v1656 = vld [vmem:[%s1649 + $0x18] sm:$0xf]
        %v1657 = vld [vmem:[%s1649 + $0x1c] sm:$0xf]
        %v1658 = vld [vmem:[%s1649 + $0x20] sm:$0xf]
        %v1659 = vld [vmem:[%s1649 + $0x24] sm:$0xf]
        %v1660 = vld [vmem:[%s1649 + $0x28] sm:$0xf]
        %v1661 = vld [vmem:[%s1649 + $0x2c] sm:$0xf]
        %v1662 = vld [vmem:[%s1649 + $0x30] sm:$0xf]
        %v1663 = vld [vmem:[%s1649 + $0x34] sm:$0xf]
        %v1664 = vld [vmem:[%s1649 + $0x38] sm:$0xf]
        %v1665 = vld [vmem:[%s1649 + $0x3c] sm:$0xf]
        %v1682 = vunpack.c.l.b16 %v1633
        %v1683 = vunpack.c.l.b16 %v1634
        %v1684 = vunpack.c.l.b16 %v1635
        %v1685 = vunpack.c.l.b16 %v1636
        %v1686 = vunpack.c.l.b16 %v1637
        %v1687 = vunpack.c.l.b16 %v1638
        %v1688 = vunpack.c.l.b16 %v1639
        %v1689 = vunpack.c.l.b16 %v1640
        %v1690 = vunpack.c.l.b16 %v1641
        %v1691 = vunpack.c.l.b16 %v1642
        %v1692 = vunpack.c.l.b16 %v1643
        %v1693 = vunpack.c.l.b16 %v1644
        %v1694 = vunpack.c.l.b16 %v1645
        %v1695 = vunpack.c.l.b16 %v1646
        %v1696 = vunpack.c.l.b16 %v1647
        %v1697 = vunpack.c.l.b16 %v1648
        %v1698 = vpack.c.b16 %v1683, %v1682
        %v1699 = vpack.c.b16 %v1685, %v1684
        %v1700 = vpack.c.b16 %v1687, %v1686
        %v1701 = vpack.c.b16 %v1689, %v1688
        %v1702 = vpack.c.b16 %v1691, %v1690
        %v1703 = vpack.c.b16 %v1693, %v1692
        %v1704 = vpack.c.b16 %v1695, %v1694
        %v1705 = vpack.c.b16 %v1697, %v1696
        %v1730 = vunpack.c.l.b16 %v1650
        %v1731 = vunpack.c.l.b16 %v1651
        %v1732 = vunpack.c.l.b16 %v1652
        %v1733 = vunpack.c.l.b16 %v1653
        %v1734 = vunpack.c.l.b16 %v1654
        %v1735 = vunpack.c.l.b16 %v1655
        %v1736 = vunpack.c.l.b16 %v1656
        %v1737 = vunpack.c.l.b16 %v1657
        %v1738 = vunpack.c.l.b16 %v1658
        %v1739 = vunpack.c.l.b16 %v1659
        %v1740 = vunpack.c.l.b16 %v1660
        %v1741 = vunpack.c.l.b16 %v1661
        %v1742 = vunpack.c.l.b16 %v1662
        %v1743 = vunpack.c.l.b16 %v1663
        %v1744 = vunpack.c.l.b16 %v1664
        %v1745 = vunpack.c.l.b16 %v1665
        %v1746 = vpack.c.b16 %v1731, %v1730
        %v1747 = vpack.c.b16 %v1733, %v1732
        %v1748 = vpack.c.b16 %v1735, %v1734
        %v1749 = vpack.c.b16 %v1737, %v1736
        %v1750 = vpack.c.b16 %v1739, %v1738
        %v1751 = vpack.c.b16 %v1741, %v1740
        %v1752 = vpack.c.b16 %v1743, %v1742
        %v1753 = vpack.c.b16 %v1745, %v1744
        %1762 = vmatprep.subr.bf16.mxu0 0
        %1763 = vmatpush1.bf16.msra.mxu0 %v1746
        %1764 = vmatprep.subr.bf16.mxu0 0
        %1765 = vmatpush1.bf16.msra.mxu0 %v1747
        %1766 = vmatprep.subr.bf16.mxu0 0
        %1767 = vmatpush1.bf16.msra.mxu0 %v1748
        %1768 = vmatprep.subr.bf16.mxu0 0
        %1769 = vmatpush1.bf16.msra.mxu0 %v1749
        %1770 = vmatprep.subr.bf16.mxu0 0
        %1771 = vmatpush1.bf16.msra.mxu0 %v1750
        %1772 = vmatprep.subr.bf16.mxu0 0
        %1773 = vmatpush1.bf16.msra.mxu0 %v1751
        %1774 = vmatprep.subr.bf16.mxu0 0
        %1775 = vmatpush1.bf16.msra.mxu0 %v1752
        %1776 = vmatprep.subr.bf16.mxu0 0
        %1777 = vmatpush1.bf16.msra.mxu0 %v1753
        %1778 = vmatprep.subr.bf16.mxu0 0
        %1779 = vmatpush1.bf16.msra.mxu0 0
        %1780 = vmatprep.subr.bf16.mxu0 0
        %1781 = vmatpush1.bf16.msra.mxu0 0
        %1782 = vmatprep.subr.bf16.mxu0 0
        %1783 = vmatpush1.bf16.msra.mxu0 0
        %1784 = vmatprep.subr.bf16.mxu0 0
        %1785 = vmatpush1.bf16.msra.mxu0 0
        %1786 = vmatprep.subr.bf16.mxu0 0
        %1787 = vmatpush1.bf16.msra.mxu0 0
        %1788 = vmatprep.subr.bf16.mxu0 0
        %1789 = vmatpush1.bf16.msra.mxu0 0
        %1790 = vmatprep.subr.bf16.mxu0 0
        %1791 = vmatpush1.bf16.msra.mxu0 0
        %1792 = vmatprep.subr.bf16.mxu0 0
        %1793 = vmatpush1.bf16.msra.mxu0 0
        %1794 = vmatprep.mubr.bf16.mxu0 0
        %1795 = vmatmul.mubr.bf16.gmra.mrb[0].mxu0 %v1698
        %v1796 = vpop.f32.mrb[0].mxu0
        %v1797 = vadd.f32 0.0, %v1796
        %v1798 = vpop.f32.mrb[0].mxu0
        %v1799 = vpop.f32.mrb[0].mxu0
        %v1800 = vadd.f32 0.0, %v1799
        %v1801 = vpop.f32.mrb[0].mxu0
        %1802 = vmatprep.mubr.bf16.mxu0 0
        %1803 = vmatmul.mubr.bf16.gmra.mrb[0].mxu0 %v1699
        %v1804 = vpop.f32.mrb[0].mxu0
        %v1805 = vadd.f32 0.0, %v1804
        %v1806 = vpop.f32.mrb[0].mxu0
        %v1807 = vpop.f32.mrb[0].mxu0
        %v1808 = vadd.f32 0.0, %v1807
        %v1809 = vpop.f32.mrb[0].mxu0
        %1810 = vmatprep.mubr.bf16.mxu0 0
        %1811 = vmatmul.mubr.bf16.gmra.mrb[0].mxu0 %v1700
        %v1812 = vpop.f32.mrb[0].mxu0
        %v1813 = vadd.f32 0.0, %v1812
        %v1814 = vpop.f32.mrb[0].mxu0
        %v1815 = vpop.f32.mrb[0].mxu0
        %v1816 = vadd.f32 0.0, %v1815
        %v1817 = vpop.f32.mrb[0].mxu0
        %1818 = vmatprep.mubr.bf16.mxu0 0
        %1819 = vmatmul.mubr.bf16.gmra.mrb[0].mxu0 %v1701
        %v1820 = vpop.f32.mrb[0].mxu0
        %v1821 = vadd.f32 0.0, %v1820
        %v1822 = vpop.f32.mrb[0].mxu0
        %v1823 = vpop.f32.mrb[0].mxu0
        %v1824 = vadd.f32 0.0, %v1823
        %v1825 = vpop.f32.mrb[0].mxu0
        %1826 = vmatprep.mubr.bf16.mxu0 0
        %1827 = vmatmul.mubr.bf16.gmra.mrb[0].mxu0 %v1702
        %v1828 = vpop.f32.mrb[0].mxu0
        %v1829 = vadd.f32 0.0, %v1828
        %v1830 = vpop.f32.mrb[0].mxu0
        %v1831 = vpop.f32.mrb[0].mxu0
        %v1832 = vadd.f32 0.0, %v1831
        %v1833 = vpop.f32.mrb[0].mxu0
        %1834 = vmatprep.mubr.bf16.mxu0 0
        %1835 = vmatmul.mubr.bf16.gmra.mrb[0].mxu0 %v1703
        %v1836 = vpop.f32.mrb[0].mxu0
        %v1837 = vadd.f32 0.0, %v1836
        %v1838 = vpop.f32.mrb[0].mxu0
        %v1839 = vpop.f32.mrb[0].mxu0
        %v1840 = vadd.f32 0.0, %v1839
        %v1841 = vpop.f32.mrb[0].mxu0
        %1842 = vmatprep.mubr.bf16.mxu0 0
        %1843 = vmatmul.mubr.bf16.gmra.mrb[0].mxu0 %v1704
        %v1844 = vpop.f32.mrb[0].mxu0
        %v1845 = vadd.f32 0.0, %v1844
        %v1846 = vpop.f32.mrb[0].mxu0
        %v1847 = vpop.f32.mrb[0].mxu0
        %v1848 = vadd.f32 0.0, %v1847
        %v1849 = vpop.f32.mrb[0].mxu0
        %1850 = vmatprep.mubr.bf16.mxu0 0
        %1851 = vmatmul.mubr.bf16.gmra.mrb[0].mxu0 %v1705
        %v1852 = vpop.f32.mrb[0].mxu0
        %v1853 = vadd.f32 0.0, %v1852
        %v1854 = vpop.f32.mrb[0].mxu0
        %v1855 = vpop.f32.mrb[0].mxu0
        %v1856 = vadd.f32 0.0, %v1855
        %v1857 = vpop.f32.mrb[0].mxu0
        %1858 = vdwg.mxu0
        %v1859 = vadd.f32 %v1616, %v1797
        %v1860 = vadd.f32 %v1617, %v1800
        %v1861 = vadd.f32 %v1618, %v1805
        %v1862 = vadd.f32 %v1619, %v1808
        %v1863 = vadd.f32 %v1620, %v1813
        %v1864 = vadd.f32 %v1621, %v1816
        %v1865 = vadd.f32 %v1622, %v1821
        %v1866 = vadd.f32 %v1623, %v1824
        %v1867 = vadd.f32 %v1624, %v1829
        %v1868 = vadd.f32 %v1625, %v1832
        %v1869 = vadd.f32 %v1626, %v1837
        %v1870 = vadd.f32 %v1627, %v1840
        %v1871 = vadd.f32 %v1628, %v1845
        %v1872 = vadd.f32 %v1629, %v1848
        %v1873 = vadd.f32 %v1630, %v1853
        %v1874 = vadd.f32 %v1631, %v1856
        %s1875 = scalar_lea.vmem %s178, 40 [#allocation2]
        %v1876 = vld [vmem:[%s1875] sm:$0xf]
        %v1877 = vld [vmem:[%s1875 + $0x4] sm:$0xf]
        %v1878 = vld [vmem:[%s1875 + $0x8] sm:$0xf]
        %v1879 = vld [vmem:[%s1875 + $0xc] sm:$0xf]
        %v1880 = vld [vmem:[%s1875 + $0x10] sm:$0xf]
        %v1881 = vld [vmem:[%s1875 + $0x14] sm:$0xf]
        %v1882 = vld [vmem:[%s1875 + $0x18] sm:$0xf]
        %v1883 = vld [vmem:[%s1875 + $0x1c] sm:$0xf]
        %v1884 = vld [vmem:[%s1875 + $0xd8] sm:$0xf]
        %v1885 = vld [vmem:[%s1875 + $0xdc] sm:$0xf]
        %v1886 = vld [vmem:[%s1875 + $0xe0] sm:$0xf]
        %v1887 = vld [vmem:[%s1875 + $0xe4] sm:$0xf]
        %v1888 = vld [vmem:[%s1875 + $0xe8] sm:$0xf]
        %v1889 = vld [vmem:[%s1875 + $0xec] sm:$0xf]
        %v1890 = vld [vmem:[%s1875 + $0xf0] sm:$0xf]
        %v1891 = vld [vmem:[%s1875 + $0xf4] sm:$0xf]
        %s1892 = scalar_lea.vmem [#allocation5], 448
        %v1893 = vld [vmem:[%s1892] sm:$0xf]
        %v1894 = vld [vmem:[%s1892 + $0x4] sm:$0xf]
        %v1895 = vld [vmem:[%s1892 + $0x8] sm:$0xf]
        %v1896 = vld [vmem:[%s1892 + $0xc] sm:$0xf]
        %v1897 = vld [vmem:[%s1892 + $0x10] sm:$0xf]
        %v1898 = vld [vmem:[%s1892 + $0x14] sm:$0xf]
        %v1899 = vld [vmem:[%s1892 + $0x18] sm:$0xf]
        %v1900 = vld [vmem:[%s1892 + $0x1c] sm:$0xf]
        %v1901 = vld [vmem:[%s1892 + $0x20] sm:$0xf]
        %v1902 = vld [vmem:[%s1892 + $0x24] sm:$0xf]
        %v1903 = vld [vmem:[%s1892 + $0x28] sm:$0xf]
        %v1904 = vld [vmem:[%s1892 + $0x2c] sm:$0xf]
        %v1905 = vld [vmem:[%s1892 + $0x30] sm:$0xf]
        %v1906 = vld [vmem:[%s1892 + $0x34] sm:$0xf]
        %v1907 = vld [vmem:[%s1892 + $0x38] sm:$0xf]
        %v1908 = vld [vmem:[%s1892 + $0x3c] sm:$0xf]
        %v1925 = vunpack.c.l.b16 %v1876
        %v1926 = vunpack.c.l.b16 %v1877
        %v1927 = vunpack.c.l.b16 %v1878
        %v1928 = vunpack.c.l.b16 %v1879
        %v1929 = vunpack.c.l.b16 %v1880
        %v1930 = vunpack.c.l.b16 %v1881
        %v1931 = vunpack.c.l.b16 %v1882
        %v1932 = vunpack.c.l.b16 %v1883
        %v1933 = vunpack.c.l.b16 %v1884
        %v1934 = vunpack.c.l.b16 %v1885
        %v1935 = vunpack.c.l.b16 %v1886
        %v1936 = vunpack.c.l.b16 %v1887
        %v1937 = vunpack.c.l.b16 %v1888
        %v1938 = vunpack.c.l.b16 %v1889
        %v1939 = vunpack.c.l.b16 %v1890
        %v1940 = vunpack.c.l.b16 %v1891
        %v1941 = vpack.c.b16 %v1926, %v1925
        %v1942 = vpack.c.b16 %v1928, %v1927
        %v1943 = vpack.c.b16 %v1930, %v1929
        %v1944 = vpack.c.b16 %v1932, %v1931
        %v1945 = vpack.c.b16 %v1934, %v1933
        %v1946 = vpack.c.b16 %v1936, %v1935
        %v1947 = vpack.c.b16 %v1938, %v1937
        %v1948 = vpack.c.b16 %v1940, %v1939
        %v1973 = vunpack.c.l.b16 %v1893
        %v1974 = vunpack.c.l.b16 %v1894
        %v1975 = vunpack.c.l.b16 %v1895
        %v1976 = vunpack.c.l.b16 %v1896
        %v1977 = vunpack.c.l.b16 %v1897
        %v1978 = vunpack.c.l.b16 %v1898
        %v1979 = vunpack.c.l.b16 %v1899
        %v1980 = vunpack.c.l.b16 %v1900
        %v1981 = vunpack.c.l.b16 %v1901
        %v1982 = vunpack.c.l.b16 %v1902
        %v1983 = vunpack.c.l.b16 %v1903
        %v1984 = vunpack.c.l.b16 %v1904
        %v1985 = vunpack.c.l.b16 %v1905
        %v1986 = vunpack.c.l.b16 %v1906
        %v1987 = vunpack.c.l.b16 %v1907
        %v1988 = vunpack.c.l.b16 %v1908
        %v1989 = vpack.c.b16 %v1974, %v1973
        %v1990 = vpack.c.b16 %v1976, %v1975
        %v1991 = vpack.c.b16 %v1978, %v1977
        %v1992 = vpack.c.b16 %v1980, %v1979
        %v1993 = vpack.c.b16 %v1982, %v1981
        %v1994 = vpack.c.b16 %v1984, %v1983
        %v1995 = vpack.c.b16 %v1986, %v1985
        %v1996 = vpack.c.b16 %v1988, %v1987
        %2005 = vmatprep.subr.bf16.mxu0 0
        %2006 = vmatpush1.bf16.msra.mxu0 %v1989
        %2007 = vmatprep.subr.bf16.mxu0 0
        %2008 = vmatpush1.bf16.msra.mxu0 %v1990
        %2009 = vmatprep.subr.bf16.mxu0 0
        %2010 = vmatpush1.bf16.msra.mxu0 %v1991
        %2011 = vmatprep.subr.bf16.mxu0 0
        %2012 = vmatpush1.bf16.msra.mxu0 %v1992
        %2013 = vmatprep.subr.bf16.mxu0 0
        %2014 = vmatpush1.bf16.msra.mxu0 %v1993
        %2015 = vmatprep.subr.bf16.mxu0 0
        %2016 = vmatpush1.bf16.msra.mxu0 %v1994
        %2017 = vmatprep.subr.bf16.mxu0 0
        %2018 = vmatpush1.bf16.msra.mxu0 %v1995
        %2019 = vmatprep.subr.bf16.mxu0 0
        %2020 = vmatpush1.bf16.msra.mxu0 %v1996
        %2021 = vmatprep.subr.bf16.mxu0 0
        %2022 = vmatpush1.bf16.msra.mxu0 0
        %2023 = vmatprep.subr.bf16.mxu0 0
        %2024 = vmatpush1.bf16.msra.mxu0 0
        %2025 = vmatprep.subr.bf16.mxu0 0
        %2026 = vmatpush1.bf16.msra.mxu0 0
        %2027 = vmatprep.subr.bf16.mxu0 0
        %2028 = vmatpush1.bf16.msra.mxu0 0
        %2029 = vmatprep.subr.bf16.mxu0 0
        %2030 = vmatpush1.bf16.msra.mxu0 0
        %2031 = vmatprep.subr.bf16.mxu0 0
        %2032 = vmatpush1.bf16.msra.mxu0 0
        %2033 = vmatprep.subr.bf16.mxu0 0
        %2034 = vmatpush1.bf16.msra.mxu0 0
        %2035 = vmatprep.subr.bf16.mxu0 0
        %2036 = vmatpush1.bf16.msra.mxu0 0
        %2037 = vmatprep.mubr.bf16.mxu0 0
        %2038 = vmatmul.mubr.bf16.gmra.mrb[0].mxu0 %v1941
        %v2039 = vpop.f32.mrb[0].mxu0
        %v2040 = vadd.f32 0.0, %v2039
        %v2041 = vpop.f32.mrb[0].mxu0
        %v2042 = vpop.f32.mrb[0].mxu0
        %v2043 = vadd.f32 0.0, %v2042
        %v2044 = vpop.f32.mrb[0].mxu0
        %2045 = vmatprep.mubr.bf16.mxu0 0
        %2046 = vmatmul.mubr.bf16.gmra.mrb[0].mxu0 %v1942
        %v2047 = vpop.f32.mrb[0].mxu0
        %v2048 = vadd.f32 0.0, %v2047
        %v2049 = vpop.f32.mrb[0].mxu0
        %v2050 = vpop.f32.mrb[0].mxu0
        %v2051 = vadd.f32 0.0, %v2050
        %v2052 = vpop.f32.mrb[0].mxu0
        %2053 = vmatprep.mubr.bf16.mxu0 0
        %2054 = vmatmul.mubr.bf16.gmra.mrb[0].mxu0 %v1943
        %v2055 = vpop.f32.mrb[0].mxu0
        %v2056 = vadd.f32 0.0, %v2055
        %v2057 = vpop.f32.mrb[0].mxu0
        %v2058 = vpop.f32.mrb[0].mxu0
        %v2059 = vadd.f32 0.0, %v2058
        %v2060 = vpop.f32.mrb[0].mxu0
        %2061 = vmatprep.mubr.bf16.mxu0 0
        %2062 = vmatmul.mubr.bf16.gmra.mrb[0].mxu0 %v1944
        %v2063 = vpop.f32.mrb[0].mxu0
        %v2064 = vadd.f32 0.0, %v2063
        %v2065 = vpop.f32.mrb[0].mxu0
        %v2066 = vpop.f32.mrb[0].mxu0
        %v2067 = vadd.f32 0.0, %v2066
        %v2068 = vpop.f32.mrb[0].mxu0
        %2069 = vmatprep.mubr.bf16.mxu0 0
        %2070 = vmatmul.mubr.bf16.gmra.mrb[0].mxu0 %v1945
        %v2071 = vpop.f32.mrb[0].mxu0
        %v2072 = vadd.f32 0.0, %v2071
        %v2073 = vpop.f32.mrb[0].mxu0
        %v2074 = vpop.f32.mrb[0].mxu0
        %v2075 = vadd.f32 0.0, %v2074
        %v2076 = vpop.f32.mrb[0].mxu0
        %2077 = vmatprep.mubr.bf16.mxu0 0
        %2078 = vmatmul.mubr.bf16.gmra.mrb[0].mxu0 %v1946
        %v2079 = vpop.f32.mrb[0].mxu0
        %v2080 = vadd.f32 0.0, %v2079
        %v2081 = vpop.f32.mrb[0].mxu0
        %v2082 = vpop.f32.mrb[0].mxu0
        %v2083 = vadd.f32 0.0, %v2082
        %v2084 = vpop.f32.mrb[0].mxu0
        %2085 = vmatprep.mubr.bf16.mxu0 0
        %2086 = vmatmul.mubr.bf16.gmra.mrb[0].mxu0 %v1947
        %v2087 = vpop.f32.mrb[0].mxu0
        %v2088 = vadd.f32 0.0, %v2087
        %v2089 = vpop.f32.mrb[0].mxu0
        %v2090 = vpop.f32.mrb[0].mxu0
        %v2091 = vadd.f32 0.0, %v2090
        %v2092 = vpop.f32.mrb[0].mxu0
        %2093 = vmatprep.mubr.bf16.mxu0 0
        %2094 = vmatmul.mubr.bf16.gmra.mrb[0].mxu0 %v1948
        %v2095 = vpop.f32.mrb[0].mxu0
        %v2096 = vadd.f32 0.0, %v2095
        %v2097 = vpop.f32.mrb[0].mxu0
        %v2098 = vpop.f32.mrb[0].mxu0
        %v2099 = vadd.f32 0.0, %v2098
        %v2100 = vpop.f32.mrb[0].mxu0
        %2101 = vdwg.mxu0
        %v2102 = vadd.f32 %v1859, %v2040
        %v2103 = vadd.f32 %v1860, %v2043
        %v2104 = vadd.f32 %v1861, %v2048
        %v2105 = vadd.f32 %v1862, %v2051
        %v2106 = vadd.f32 %v1863, %v2056
        %v2107 = vadd.f32 %v1864, %v2059
        %v2108 = vadd.f32 %v1865, %v2064
        %v2109 = vadd.f32 %v1866, %v2067
        %v2110 = vadd.f32 %v1867, %v2072
        %v2111 = vadd.f32 %v1868, %v2075
        %v2112 = vadd.f32 %v1869, %v2080
        %v2113 = vadd.f32 %v1870, %v2083
        %v2114 = vadd.f32 %v1871, %v2088
        %v2115 = vadd.f32 %v1872, %v2091
        %v2116 = vadd.f32 %v1873, %v2096
        %v2117 = vadd.f32 %v1874, %v2099
        %s2118 = scalar_lea.vmem %s178, 76 [#allocation2]
        %v2119 = vld [vmem:[%s2118] sm:$0xf]
        %v2120 = vld [vmem:[%s2118 + $0x4] sm:$0xf]
        %v2121 = vld [vmem:[%s2118 + $0x8] sm:$0xf]
        %v2122 = vld [vmem:[%s2118 + $0xc] sm:$0xf]
        %v2123 = vld [vmem:[%s2118 + $0x10] sm:$0xf]
        %v2124 = vld [vmem:[%s2118 + $0x14] sm:$0xf]
        %v2125 = vld [vmem:[%s2118 + $0x18] sm:$0xf]
        %v2126 = vld [vmem:[%s2118 + $0x1c] sm:$0xf]
        %v2127 = vld [vmem:[%s2118 + $0xd8] sm:$0xf]
        %v2128 = vld [vmem:[%s2118 + $0xdc] sm:$0xf]
        %v2129 = vld [vmem:[%s2118 + $0xe0] sm:$0xf]
        %v2130 = vld [vmem:[%s2118 + $0xe4] sm:$0xf]
        %v2131 = vld [vmem:[%s2118 + $0xe8] sm:$0xf]
        %v2132 = vld [vmem:[%s2118 + $0xec] sm:$0xf]
        %v2133 = vld [vmem:[%s2118 + $0xf0] sm:$0xf]
        %v2134 = vld [vmem:[%s2118 + $0xf4] sm:$0xf]
        %s2135 = scalar_lea.vmem [#allocation5], 512
        %v2136 = vld [vmem:[%s2135] sm:$0xf]
        %v2137 = vld [vmem:[%s2135 + $0x4] sm:$0xf]
        %v2138 = vld [vmem:[%s2135 + $0x8] sm:$0xf]
        %v2139 = vld [vmem:[%s2135 + $0xc] sm:$0xf]
        %v2140 = vld [vmem:[%s2135 + $0x10] sm:$0xf]
        %v2141 = vld [vmem:[%s2135 + $0x14] sm:$0xf]
        %v2142 = vld [vmem:[%s2135 + $0x18] sm:$0xf]
        %v2143 = vld [vmem:[%s2135 + $0x1c] sm:$0xf]
        %v2144 = vld [vmem:[%s2135 + $0x20] sm:$0xf]
        %v2145 = vld [vmem:[%s2135 + $0x24] sm:$0xf]
        %v2146 = vld [vmem:[%s2135 + $0x28] sm:$0xf]
        %v2147 = vld [vmem:[%s2135 + $0x2c] sm:$0xf]
        %v2148 = vld [vmem:[%s2135 + $0x30] sm:$0xf]
        %v2149 = vld [vmem:[%s2135 + $0x34] sm:$0xf]
        %v2150 = vld [vmem:[%s2135 + $0x38] sm:$0xf]
        %v2151 = vld [vmem:[%s2135 + $0x3c] sm:$0xf]
        %v2168 = vunpack.c.l.b16 %v2119
        %v2169 = vunpack.c.l.b16 %v2120
        %v2170 = vunpack.c.l.b16 %v2121
        %v2171 = vunpack.c.l.b16 %v2122
        %v2172 = vunpack.c.l.b16 %v2123
        %v2173 = vunpack.c.l.b16 %v2124
        %v2174 = vunpack.c.l.b16 %v2125
        %v2175 = vunpack.c.l.b16 %v2126
        %v2176 = vunpack.c.l.b16 %v2127
        %v2177 = vunpack.c.l.b16 %v2128
        %v2178 = vunpack.c.l.b16 %v2129
        %v2179 = vunpack.c.l.b16 %v2130
        %v2180 = vunpack.c.l.b16 %v2131
        %v2181 = vunpack.c.l.b16 %v2132
        %v2182 = vunpack.c.l.b16 %v2133
        %v2183 = vunpack.c.l.b16 %v2134
        %v2184 = vpack.c.b16 %v2169, %v2168
        %v2185 = vpack.c.b16 %v2171, %v2170
        %v2186 = vpack.c.b16 %v2173, %v2172
        %v2187 = vpack.c.b16 %v2175, %v2174
        %v2188 = vpack.c.b16 %v2177, %v2176
        %v2189 = vpack.c.b16 %v2179, %v2178
        %v2190 = vpack.c.b16 %v2181, %v2180
        %v2191 = vpack.c.b16 %v2183, %v2182
        %v2216 = vunpack.c.l.b16 %v2136
        %v2217 = vunpack.c.l.b16 %v2137
        %v2218 = vunpack.c.l.b16 %v2138
        %v2219 = vunpack.c.l.b16 %v2139
        %v2220 = vunpack.c.l.b16 %v2140
        %v2221 = vunpack.c.l.b16 %v2141
        %v2222 = vunpack.c.l.b16 %v2142
        %v2223 = vunpack.c.l.b16 %v2143
        %v2224 = vunpack.c.l.b16 %v2144
        %v2225 = vunpack.c.l.b16 %v2145
        %v2226 = vunpack.c.l.b16 %v2146
        %v2227 = vunpack.c.l.b16 %v2147
        %v2228 = vunpack.c.l.b16 %v2148
        %v2229 = vunpack.c.l.b16 %v2149
        %v2230 = vunpack.c.l.b16 %v2150
        %v2231 = vunpack.c.l.b16 %v2151
        %v2232 = vpack.c.b16 %v2217, %v2216
        %v2233 = vpack.c.b16 %v2219, %v2218
        %v2234 = vpack.c.b16 %v2221, %v2220
        %v2235 = vpack.c.b16 %v2223, %v2222
        %v2236 = vpack.c.b16 %v2225, %v2224
        %v2237 = vpack.c.b16 %v2227, %v2226
        %v2238 = vpack.c.b16 %v2229, %v2228
        %v2239 = vpack.c.b16 %v2231, %v2230
        %2248 = vmatprep.subr.bf16.mxu0 0
        %2249 = vmatpush1.bf16.msra.mxu0 %v2232
        %2250 = vmatprep.subr.bf16.mxu0 0
        %2251 = vmatpush1.bf16.msra.mxu0 %v2233
        %2252 = vmatprep.subr.bf16.mxu0 0
        %2253 = vmatpush1.bf16.msra.mxu0 %v2234
        %2254 = vmatprep.subr.bf16.mxu0 0
        %2255 = vmatpush1.bf16.msra.mxu0 %v2235
        %2256 = vmatprep.subr.bf16.mxu0 0
        %2257 = vmatpush1.bf16.msra.mxu0 %v2236
        %2258 = vmatprep.subr.bf16.mxu0 0
        %2259 = vmatpush1.bf16.msra.mxu0 %v2237
        %2260 = vmatprep.subr.bf16.mxu0 0
        %2261 = vmatpush1.bf16.msra.mxu0 %v2238
        %2262 = vmatprep.subr.bf16.mxu0 0
        %2263 = vmatpush1.bf16.msra.mxu0 %v2239
        %2264 = vmatprep.subr.bf16.mxu0 0
        %2265 = vmatpush1.bf16.msra.mxu0 0
        %2266 = vmatprep.subr.bf16.mxu0 0
        %2267 = vmatpush1.bf16.msra.mxu0 0
        %2268 = vmatprep.subr.bf16.mxu0 0
        %2269 = vmatpush1.bf16.msra.mxu0 0
        %2270 = vmatprep.subr.bf16.mxu0 0
        %2271 = vmatpush1.bf16.msra.mxu0 0
        %2272 = vmatprep.subr.bf16.mxu0 0
        %2273 = vmatpush1.bf16.msra.mxu0 0
        %2274 = vmatprep.subr.bf16.mxu0 0
        %2275 = vmatpush1.bf16.msra.mxu0 0
        %2276 = vmatprep.subr.bf16.mxu0 0
        %2277 = vmatpush1.bf16.msra.mxu0 0
        %2278 = vmatprep.subr.bf16.mxu0 0
        %2279 = vmatpush1.bf16.msra.mxu0 0
        %2280 = vmatprep.mubr.bf16.mxu0 0
        %2281 = vmatmul.mubr.bf16.gmra.mrb[0].mxu0 %v2184
        %v2282 = vpop.f32.mrb[0].mxu0
        %v2283 = vadd.f32 0.0, %v2282
        %v2284 = vpop.f32.mrb[0].mxu0
        %v2285 = vpop.f32.mrb[0].mxu0
        %v2286 = vadd.f32 0.0, %v2285
        %v2287 = vpop.f32.mrb[0].mxu0
        %2288 = vmatprep.mubr.bf16.mxu0 0
        %2289 = vmatmul.mubr.bf16.gmra.mrb[0].mxu0 %v2185
        %v2290 = vpop.f32.mrb[0].mxu0
        %v2291 = vadd.f32 0.0, %v2290
        %v2292 = vpop.f32.mrb[0].mxu0
        %v2293 = vpop.f32.mrb[0].mxu0
        %v2294 = vadd.f32 0.0, %v2293
        %v2295 = vpop.f32.mrb[0].mxu0
        %2296 = vmatprep.mubr.bf16.mxu0 0
        %2297 = vmatmul.mubr.bf16.gmra.mrb[0].mxu0 %v2186
        %v2298 = vpop.f32.mrb[0].mxu0
        %v2299 = vadd.f32 0.0, %v2298
        %v2300 = vpop.f32.mrb[0].mxu0
        %v2301 = vpop.f32.mrb[0].mxu0
        %v2302 = vadd.f32 0.0, %v2301
        %v2303 = vpop.f32.mrb[0].mxu0
        %2304 = vmatprep.mubr.bf16.mxu0 0
        %2305 = vmatmul.mubr.bf16.gmra.mrb[0].mxu0 %v2187
        %v2306 = vpop.f32.mrb[0].mxu0
        %v2307 = vadd.f32 0.0, %v2306
        %v2308 = vpop.f32.mrb[0].mxu0
        %v2309 = vpop.f32.mrb[0].mxu0
        %v2310 = vadd.f32 0.0, %v2309
        %v2311 = vpop.f32.mrb[0].mxu0
        %2312 = vmatprep.mubr.bf16.mxu0 0
        %2313 = vmatmul.mubr.bf16.gmra.mrb[0].mxu0 %v2188
        %v2314 = vpop.f32.mrb[0].mxu0
        %v2315 = vadd.f32 0.0, %v2314
        %v2316 = vpop.f32.mrb[0].mxu0
        %v2317 = vpop.f32.mrb[0].mxu0
        %v2318 = vadd.f32 0.0, %v2317
        %v2319 = vpop.f32.mrb[0].mxu0
        %2320 = vmatprep.mubr.bf16.mxu0 0
        %2321 = vmatmul.mubr.bf16.gmra.mrb[0].mxu0 %v2189
        %v2322 = vpop.f32.mrb[0].mxu0
        %v2323 = vadd.f32 0.0, %v2322
        %v2324 = vpop.f32.mrb[0].mxu0
        %v2325 = vpop.f32.mrb[0].mxu0
        %v2326 = vadd.f32 0.0, %v2325
        %v2327 = vpop.f32.mrb[0].mxu0
        %2328 = vmatprep.mubr.bf16.mxu0 0
        %2329 = vmatmul.mubr.bf16.gmra.mrb[0].mxu0 %v2190
        %v2330 = vpop.f32.mrb[0].mxu0
        %v2331 = vadd.f32 0.0, %v2330
        %v2332 = vpop.f32.mrb[0].mxu0
        %v2333 = vpop.f32.mrb[0].mxu0
        %v2334 = vadd.f32 0.0, %v2333
        %v2335 = vpop.f32.mrb[0].mxu0
        %2336 = vmatprep.mubr.bf16.mxu0 0
        %2337 = vmatmul.mubr.bf16.gmra.mrb[0].mxu0 %v2191
        %v2338 = vpop.f32.mrb[0].mxu0
        %v2339 = vadd.f32 0.0, %v2338
        %v2340 = vpop.f32.mrb[0].mxu0
        %v2341 = vpop.f32.mrb[0].mxu0
        %v2342 = vadd.f32 0.0, %v2341
        %v2343 = vpop.f32.mrb[0].mxu0
        %2344 = vdwg.mxu0
        %v2345 = vadd.f32 %v2102, %v2283
        %v2346 = vadd.f32 %v2103, %v2286
        %v2347 = vadd.f32 %v2104, %v2291
        %v2348 = vadd.f32 %v2105, %v2294
        %v2349 = vadd.f32 %v2106, %v2299
        %v2350 = vadd.f32 %v2107, %v2302
        %v2351 = vadd.f32 %v2108, %v2307
        %v2352 = vadd.f32 %v2109, %v2310
        %v2353 = vadd.f32 %v2110, %v2315
        %v2354 = vadd.f32 %v2111, %v2318
        %v2355 = vadd.f32 %v2112, %v2323
        %v2356 = vadd.f32 %v2113, %v2326
        %v2357 = vadd.f32 %v2114, %v2331
        %v2358 = vadd.f32 %v2115, %v2334
        %v2359 = vadd.f32 %v2116, %v2339
        %v2360 = vadd.f32 %v2117, %v2342
        %v2361 = vld [vmem:[%s2] sm:$0x1]
        %v2363 = vlaneseq
        %v2364 = vshrl.u32 %v2363, 7
        %v2365 = vsub.s32 0, %v2364
        %v2366 = vrot.slane %v2361, %v2365
        %v2368 = vadd.f32 %v2345, %v2366
        %v2369 = vadd.f32 %v2346, %v2366
        %v2370 = vadd.f32 %v2347, %v2366
        %v2371 = vadd.f32 %v2348, %v2366
        %v2372 = vadd.f32 %v2349, %v2366
        %v2373 = vadd.f32 %v2350, %v2366
        %v2374 = vadd.f32 %v2351, %v2366
        %v2375 = vadd.f32 %v2352, %v2366
        %v2376 = vadd.f32 %v2353, %v2366
        %v2377 = vadd.f32 %v2354, %v2366
        %v2378 = vadd.f32 %v2355, %v2366
        %v2379 = vadd.f32 %v2356, %v2366
        %v2380 = vadd.f32 %v2357, %v2366
        %v2381 = vadd.f32 %v2358, %v2366
        %v2382 = vadd.f32 %v2359, %v2366
        %v2383 = vadd.f32 %v2360, %v2366
        %2384 = vst [vmem:[%s204] sm:$0xff] %v2368
        %2385 = vst [vmem:[%s204 + $0x8] sm:$0xff] %v2369
        %2386 = vst [vmem:[%s204 + $0x10] sm:$0xff] %v2370
        %2387 = vst [vmem:[%s204 + $0x18] sm:$0xff] %v2371
        %2388 = vst [vmem:[%s204 + $0x20] sm:$0xff] %v2372
        %2389 = vst [vmem:[%s204 + $0x28] sm:$0xff] %v2373
        %2390 = vst [vmem:[%s204 + $0x30] sm:$0xff] %v2374
        %2391 = vst [vmem:[%s204 + $0x38] sm:$0xff] %v2375
        %2392 = vst [vmem:[%s204 + $0x40] sm:$0xff] %v2376
        %2393 = vst [vmem:[%s204 + $0x48] sm:$0xff] %v2377
        %2394 = vst [vmem:[%s204 + $0x50] sm:$0xff] %v2378
        %2395 = vst [vmem:[%s204 + $0x58] sm:$0xff] %v2379
        %2396 = vst [vmem:[%s204 + $0x60] sm:$0xff] %v2380
        %2397 = vst [vmem:[%s204 + $0x68] sm:$0xff] %v2381
        %2398 = vst [vmem:[%s204 + $0x70] sm:$0xff] %v2382
        %2399 = vst [vmem:[%s204 + $0x78] sm:$0xff] %v2383
        %s2400 = sand.u32 %s97, 1
        %s2401 = scalar_lea.sflag [#allocation4], %s2400
        %s2402 = sand.u32 %s97, 1
        %s2403 = smul.addr %s2402, 128
        %s2404 = scalar_lea.vmem [#allocation7], %s2403
        // Predicated region
        $region41: #{tpu_custom_call.1} parent=31 // pred_check
          %p2405 = pneg %p107
        $region42: #{tpu_custom_call.1} parent=31 // pred_check_branch
          %2407 = sbr.rel (%p2405) target = $region44
        $region43: #{tpu_custom_call.1} parent=31 // pred_region
          %s2408 = smul.u32 2, %s21
          %s2410 = ssub.s32 2048, 2048
          %2411 = vsyncadd %s2401, %s2410
          %s2412 = smul.addr %s2408, 8
          %s2413 = smul.addr %s2412, 128
          %s2414 = scalar_lea.hbm %s3, %s2413
          %s2415 = sshll.u32 %s2404, 4
          %s2416 = int_to_ptr.vmem [resolvable:$true] %s2415
          %2421 = dma.vmem_to_hbm [thread:$0]  %s2416, 2048, %s2414, %s2401, 128, 128, 8
        $region44: #{tpu_custom_call.1} parent=31 // pred_fallthru
          _
      $region32: #{tpu_custom_call.1} parent=5 // pred_fallthru
        _
      %p2422 = scmp.le.s32.totalorder 2, %s16
      // Predicated region
      $region45: #{tpu_custom_call.1} parent=5 // pred_check
        %p2423 = pneg %p2422
      $region46: #{tpu_custom_call.1} parent=5 // pred_check_branch
        %2425 = sbr.rel (%p2423) target = $region48
      $region47: #{tpu_custom_call.1} parent=5 // pred_region
        %s2426 = ssub.s32 %s16, 2
        // Predicated region
        $region49: #{tpu_custom_call.1} parent=47 // pred_check
          %p2427 = pneg %p113
        $region50: #{tpu_custom_call.1} parent=47 // pred_check_branch
          %2429 = sbr.rel (%p2427) target = $region52
        $region51: #{tpu_custom_call.1} parent=47 // pred_region
          %s2430 = sand.u32 %s98, 1
          %s2431 = scalar_lea.sflag [#allocation4], %s2430
          %s2432 = sand.u32 %s98, 1
          %s2433 = smul.addr %s2432, 128
          %s2434 = scalar_lea.vmem [#allocation7], %s2433
          %2435 = dma.done %s2431, 2048
        $region52: #{tpu_custom_call.1} parent=47 // pred_fallthru
          _
      $region48: #{tpu_custom_call.1} parent=5 // pred_fallthru
        _
    $region6: #{tpu_custom_call.1} parent=1 // loop_footer
      %s20 = sadd.s32 1, %s16
    $region7: #{tpu_custom_call.1} parent=1 // loop_footer_branch
      %15 = sbr.rel target = $region3
    $region8: #{tpu_custom_call.1} parent=1 // loop_exit
      _
    %2436 = vsyncpa [#allocation3], 1
    %s2437 = scalar_lea.sflag [#allocation3], 1
    %2438 = vsyncpa %s2437, 1
    %2439 = vsyncpa [#allocation6], 1
    %2440 = vsyncpa [#allocation4], 1
    %s2441 = scalar_lea.sflag [#allocation4], 1
    %2442 = vsyncpa %s2441, 1

</llo_original>
